<compile_context>
chip_gen: v7x
topology: tpu7x:2x2x1
jax: 0.10.0
libtpu: 0.0.40
codegen_flags: <defaults>
</compile_context>

<pallas_src>
import functools

import jax
import jax.numpy as jnp
from jax import lax
from jax.experimental import pallas as pl
from jax.experimental.pallas import tpu as pltpu

LRELU_SLOPE = 0.1  # slope used throughout the stylish-tts codebase


# ------------------------- hardware / tile selection ----------------------- #

def _vmem_capacity_bytes():
    """Physical VMEM of the local generation (v5e/v6e: 128 MiB, v7x: 64 MiB)."""
    try:
        info = pltpu.get_tpu_info()
        for name in ("vmem_capacity_bytes", "vmem_bytes", "vmem_size_bytes"):
            v = getattr(info, name, None)
            if v:
                return int(v)
    except Exception:
        pass
    return 64 * 2**20  # conservative: assume the smallest (v7x) VMEM


_PRE_T_CANDS = (1024, 896, 768, 640, 512, 384, 256, 128)


def _pre_time_tile(T):
    # Lane dim of the NCW input block: must be a multiple of 128 or == T.
    if T <= 128:
        return T
    for d in _PRE_T_CANDS:          # prefer an exact divisor (no tail tile)
        if d <= T and T % d == 0:
            return d
    for d in _PRE_T_CANDS:          # otherwise the largest tile <= T; the
        if d <= T:                  # boundary block is clamped by the pipeline
            return d                # (time columns are independent).
    return T


def _pre_cin_tile(Cin, t_tile, itemsize, cap):
    # Cin is a reduction axis: tile must divide Cin exactly (no OOB garbage in
    # the accumulator).  Budget ~45% of VMEM for the double-buffered input
    # block (v7x: c_tile=3328 @ t_tile=1024, v5e/v6e: c_tile=4992).
    budget = max(2 * 2**20, int(0.45 * cap))
    best = None
    for d in range(128, Cin + 1, 128):
        if Cin % d == 0 and 2 * d * t_tile * itemsize <= budget:
            best = d
    if best is not None:
        return best
    if Cin >= 128 and Cin % 128 == 0:
        return 128
    return Cin


def _stack_tile(T):
    if T < 256:
        return max(16, -(-T // 16) * 16)       # multiple of 16 for the halo map
    for cand in (1024, 512, 256):
        if cand <= T and (-(-T // cand)) * cand <= T + cand // 4:
            return cand
    return 256


# ------------------------------ pre kernel --------------------------------- #

def _pre_kernel(x_ref, w_ref, b_ref, o_ref, acc_ref, *, n_k):
    # x_ref : (1, c_tile, t_tile)   NCW input slice (any float dtype)
    # w_ref : (n_k, Cout, c_tile)   full pre weight, bf16, VMEM-resident
    # b_ref : (Cout, 1)             f32
    # o_ref : (1, t_tile, Cout)     bf16 time-major output
    # acc   : (Cout, t_tile)        f32, persists across the Cin reduction axis
    k = pl.program_id(2)

    @pl.when(k == 0)
    def _():
        acc_ref[...] = jnp.zeros_like(acc_ref)

    x = x_ref[0].astype(jnp.bfloat16)                         # (c_tile, t_tile)
    acc_ref[...] += jnp.dot(w_ref[k], x,                      # resident weight slice
                            preferred_element_type=jnp.float32)

    @pl.when(k == n_k - 1)
    def _():
        # small in-VMEM transpose = the folded NCW->NTC layout change
        o_ref[0] = jnp.transpose(acc_ref[...] + b_ref[...]).astype(o_ref.dtype)


def pre_conv1x1(x_nct, w, b):
    """self.pre (1x1 Conv1d) on NCW input.  Returns (B, T, Cout) bf16."""
    B, Cin, T = x_nct.shape
    Cout = w.shape[0]
    cap = _vmem_capacity_bytes()
    itemsize = x_nct.dtype.itemsize
    t_tile = _pre_time_tile(T)
    c_tile = _pre_cin_tile(Cin, t_tile, itemsize, cap)
    n_t = pl.cdiv(T, t_tile)
    n_k = Cin // c_tile

    # Full weight, reshaped so w_full[k] is the (Cout, c_tile) slice for the
    # k-th Cin tile; constant index map => DMA'd to VMEM once and kept.
    w_full = jnp.transpose(
        w[:, :, 0].astype(jnp.bfloat16).reshape(Cout, n_k, c_tile), (1, 0, 2))
    b_col = b.reshape(Cout, 1).astype(jnp.float32)

    flops = 2 * B * T * Cin * Cout
    bytes_acc = int(x_nct.size * itemsize + w_full.size * 2 + B * T * Cout * 2)
    footprint = (2 * c_tile * t_tile * itemsize          # double-buffered input
                 + w_full.size * 2 + Cout * 4            # resident weight + bias
                 + 2 * t_tile * Cout * 2                 # double-buffered output
                 + Cout * t_tile * 4)                    # f32 accumulator
    vmem_limit = int(min(0.9 * cap, max(32 * 2**20, footprint + 12 * 2**20)))

    return pl.pallas_call(
        functools.partial(_pre_kernel, n_k=n_k),
        out_shape=jax.ShapeDtypeStruct((B, T, Cout), jnp.bfloat16),
        grid_spec=pltpu.PrefetchScalarGridSpec(
            num_scalar_prefetch=0,
            grid=(B, n_t, n_k),
            in_specs=[
                pl.BlockSpec((1, c_tile, t_tile), lambda bi, ti, ki: (bi, ki, ti)),
                pl.BlockSpec(w_full.shape, lambda bi, ti, ki: (0, 0, 0)),
                pl.BlockSpec((Cout, 1), lambda bi, ti, ki: (0, 0)),
            ],
            out_specs=pl.BlockSpec((1, t_tile, Cout),
                                   lambda bi, ti, ki: (bi, ti, 0)),
            scratch_shapes=[pltpu.VMEM((Cout, t_tile), jnp.float32)],
        ),
        compiler_params=pltpu.CompilerParams(
            dimension_semantics=("parallel", "parallel", "arbitrary"),
            vmem_limit_bytes=vmem_limit,
        ),
        cost_estimate=pl.CostEstimate(flops=flops, transcendentals=0,
                                      bytes_accessed=bytes_acc),
    )(x_nct, w_full, b_col)


# ------------------------- fused conv-stack kernel -------------------------- #

def _stack_kernel(cur_ref, halo_ref,
                  w1_ref, b1_ref, w2_ref, b2_ref, w3_ref, b3_ref,
                  w4_ref, b4_ref, o_ref, *, t_tile, T, slope):
    t0 = pl.program_id(1) * t_tile

    # Window of original positions [t0-7, t0+t_tile+7): current tile plus a
    # 14-row halo block (instead of a second full tile).
    win = jnp.concatenate([cur_ref[0], halo_ref[0][:14]], axis=0)

    def conv_lrelu(x, w_ref, b_ref, K, out_len, off):
        # im2col: one MXU contraction over K*Cin so the MXU accumulates over
        # the taps internally (no per-tap f32 accumulator passes).
        slab = jnp.concatenate([x[k:k + out_len] for k in range(K)], axis=1)
        y = jnp.dot(slab, w_ref[...], preferred_element_type=jnp.float32)
        y = y + b_ref[...]
        y = jnp.where(y >= 0.0, y, y * slope)
        # Per-layer zero padding at the sequence boundaries, as a cheap
        # (out_len, 1) 0/1 column and a single bf16 broadcast multiply.
        pos = t0 + off + lax.broadcasted_iota(jnp.int32, (out_len, 1), 0)
        valid = ((pos >= 0) & (pos < T)).astype(jnp.bfloat16)
        return y.astype(jnp.bfloat16) * valid

    y = conv_lrelu(win, w1_ref, b1_ref, 5, t_tile + 10, -5)    # convs[0]
    y = conv_lrelu(y, w2_ref, b2_ref, 5, t_tile + 6, -3)       # convs[1]
    y = conv_lrelu(y, w3_ref, b3_ref, 5, t_tile + 2, -1)       # convs[2]

    # conv_post (K=3, Cout=1): tiny epilogue; a full im2col slab would be a
    # large copy for an N=1 matmul, so keep the 3-tap loop here.
    acc = jnp.dot(y[0:t_tile], w4_ref[0], preferred_element_type=jnp.float32)
    acc = acc + jnp.dot(y[1:1 + t_tile], w4_ref[1],
                        preferred_element_type=jnp.float32)
    acc = acc + jnp.dot(y[2:2 + t_tile], w4_ref[2],
                        preferred_element_type=jnp.float32)
    # TODO(synk): a lane-dense (1, t_tile) row store (transpose of this column)
    # would avoid masked vst's in the epilogue; kept column-form for lowering
    # robustness.
    o_ref[0] = (acc + b4_ref[...]).astype(o_ref.dtype)


def conv_stack(y0, params, T):
    """convs[0..2] + leaky_relu + conv_post fused.  y0: (B, T, ic) bf16 -> (B, T) f32."""
    B, _, ic = y0.shape
    t_tile = _stack_tile(T)
    n_t = -(-T // t_tile)                 # cdiv
    Tc = n_t * t_tile
    Tp = Tc + 16                          # 16 extra rows so the last halo block exists

    # 7 leading zeros implement convs[0]'s left padding; trailing zeros cover
    # the (possibly partial) last tile plus the 14-row halo.
    # TODO(synk): the jnp.pad pass could be removed entirely with clamped halo
    # index maps + in-kernel window masking.
    y0p = jnp.pad(y0, ((0, 0), (7, Tp - 7 - T), (0, 0)))

    (w1, b1), (w2, b2), (w3, b3), (w4, b4) = params

    def prep(w, b):
        # torch (Cout, Cin, K) -> (K*Cin, Cout) matching the im2col slab order.
        K, ci, co = w.shape[2], w.shape[1], w.shape[0]
        wt = jnp.transpose(w, (2, 1, 0)).reshape(K * ci, co).astype(jnp.bfloat16)
        return wt, b.reshape(1, -1).astype(jnp.float32)

    w1t, b1t = prep(w1, b1)
    w2t, b2t = prep(w2, b2)
    w3t, b3t = prep(w3, b3)
    w4t = jnp.transpose(w4, (2, 1, 0)).astype(jnp.bfloat16)     # (3, c3, 1)
    b4t = b4.reshape(1, 1).astype(jnp.float32)

    c1, c2, c3 = w1.shape[0], w2.shape[0], w3.shape[0]
    cap = _vmem_capacity_bytes()
    w_bytes = (w1t.size + w2t.size + w3t.size + w4t.size) * 2
    flops = 2 * B * Tc * (5 * ic * c1 + 5 * c1 * c2 + 5 * c2 * c3 + 3 * c3)
    bytes_acc = int(y0p.size * 2 + w_bytes + B * Tc * 4)
    interm = ((t_tile + 14) * ic * 2
              + (t_tile + 10) * (5 * ic * 2 + c1 * 6)
              + (t_tile + 6) * (5 * c1 * 2 + c2 * 6)
              + (t_tile + 2) * (5 * c2 * 2 + c3 * 6) + t_tile * 8)
    footprint = (2 * t_tile * ic * 2 + 2 * 16 * ic * 2 + w_bytes
                 + 2 * t_tile * 4 + interm)
    vmem_limit = int(min(0.9 * cap, max(32 * 2**20, footprint + 16 * 2**20)))

    def full(a):
        return pl.BlockSpec(a.shape, lambda bi, ti: (0,) * a.ndim)

    kern = functools.partial(_stack_kernel, t_tile=t_tile, T=T,
                             slope=LRELU_SLOPE)
    out = pl.pallas_call(
        kern,
        out_shape=jax.ShapeDtypeStruct((B, Tc, 1), jnp.float32),
        grid_spec=pltpu.PrefetchScalarGridSpec(
            num_scalar_prefetch=0,
            grid=(B, n_t),
            in_specs=[
                # current tile
                pl.BlockSpec((1, t_tile, ic), lambda bi, ti: (bi, ti, 0)),
                # 16-row halo block starting right after the current tile
                pl.BlockSpec((1, 16, ic),
                             lambda bi, ti: (bi, (ti + 1) * (t_tile // 16), 0)),
                full(w1t), full(b1t), full(w2t), full(b2t),
                full(w3t), full(b3t), full(w4t), full(b4t),
            ],
            out_specs=pl.BlockSpec((1, t_tile, 1), lambda bi, ti: (bi, ti, 0)),
        ),
        compiler_params=pltpu.CompilerParams(
            dimension_semantics=("parallel", "parallel"),
            vmem_limit_bytes=vmem_limit,
        ),
        cost_estimate=pl.CostEstimate(flops=flops, transcendentals=0,
                                      bytes_accessed=bytes_acc),
    )(y0p, y0p, w1t, b1t, w2t, b2t, w3t, b3t, w4t, b4t)
    # Rows in [T, Tc) only hold bias values; slice them off before returning.
    return out[:, :T, 0]


# ------------------------- parameters & forward --------------------------- #

def init_params(key, slm_hidden=768, slm_layers=13, initial_channel=64):
    """Deterministic synthetic weights matching WavLMDiscriminator.__init__ shapes."""
    c_pre_in = slm_hidden * slm_layers
    ic = initial_channel
    shapes = [                     # (Cout, Cin, K), torch Conv1d layout
        (ic, c_pre_in, 1),         # pre
        (ic * 2, ic, 5),           # convs[0]
        (ic * 4, ic * 2, 5),       # convs[1]
        (ic * 4, ic * 4, 5),       # convs[2]
        (1, ic * 4, 3),            # conv_post
    ]
    params = []
    for i, (co, ci, k) in enumerate(shapes):
        kw, kb = jax.random.split(jax.random.fold_in(key, i))
        scale = 1.0 / jnp.sqrt(jnp.float32(ci * k))
        w = jax.random.uniform(kw, (co, ci, k), jnp.float32, -scale, scale)
        b = jax.random.uniform(kb, (co,), jnp.float32, -scale, scale)
        params.append((w, b))
    return params


def wavlm_discriminator_forward(x_nct, params):
    """x_nct: (B, slm_hidden*slm_layers, T) as in the PyTorch module. Returns (B, T)."""
    wp, bp = params[0]
    y0 = pre_conv1x1(x_nct, wp, bp)              # (B, T, ic) bf16, NCW fold-in
    return conv_stack(y0, params[1:], x_nct.shape[2])   # (B, T) f32


# --------------------------- pure-JAX reference ---------------------------- #
# Mirrors the kernel's cast points (bf16 operands, f32 accumulation).

def _forward_ref(x_nct, params):
    (wp, bp), rest = params[0], params[1:]
    x = jnp.transpose(x_nct, (0, 2, 1)).astype(jnp.bfloat16)        # (B, T, Cin)
    w0 = jnp.transpose(wp[:, :, 0], (1, 0)).astype(jnp.bfloat16)    # (Cin, Cout)
    y = jnp.einsum("btc,co->bto", x, w0,
                   preferred_element_type=jnp.float32) + bp
    y = y.astype(jnp.bfloat16)
    for li, (w, b) in enumerate(rest):
        K = w.shape[-1]
        pad = (K - 1) // 2
        wt = jnp.transpose(w, (2, 1, 0)).astype(jnp.bfloat16)       # (K, Cin, Cout)
        T = y.shape[1]
        yp = jnp.pad(y, ((0, 0), (pad, pad), (0, 0)))
        acc = jnp.zeros((y.shape[0], T, w.shape[0]), jnp.float32)
        for k in range(K):
            acc = acc + jnp.einsum("btc,co->bto", yp[:, k:k + T, :], wt[k],
                                   preferred_element_type=jnp.float32)
        acc = acc + b
        if li < len(rest) - 1:
            acc = jnp.where(acc >= 0.0, acc, acc * LRELU_SLOPE)
            y = acc.astype(jnp.bfloat16)
        else:
            y = acc
    return y.reshape(y.shape[0], -1)


# ---------------------------------- main ----------------------------------- #

if __name__ == "__main__":
    # Small shapes consistent with the module structure.
    slm_hidden, slm_layers, initial_channel = 32, 2, 16
    B, T = 2, 16
    C_in = slm_hidden * slm_layers  # 64

    key = jax.random.PRNGKey(0)
    kx, kp = jax.random.split(key)
    x = jax.random.normal(kx, (B, C_in, T), jnp.float32)  # (B, C, T) like PyTorch
    params = init_params(kp, slm_hidden, slm_layers, initial_channel)

    fwd = jax.jit(wavlm_discriminator_forward)
    out = jax.block_until_ready(fwd(x, params))
    assert out.shape == (B, T), out.shape

    ref = _forward_ref(x, params)
    err = float(jnp.max(jnp.abs(out - ref)))
    assert jnp.allclose(out, ref, atol=2e-2, rtol=2e-2), err

    print("KERNEL_OK")
</pallas_src>

<mosaic_0001>
module attributes {stable_mosaic.version = 11 : i64} {
  func.func @_pre_kernel(%arg0: i32, %arg1: i32, %arg2: i32, %arg3: memref<1x64x16xf32, #tpu.memory_space<vmem>>, %arg4: memref<1x16x64xbf16, #tpu.memory_space<vmem>>, %arg5: memref<16x1xf32, #tpu.memory_space<vmem>>, %arg6: memref<1x16x16xbf16, #tpu.memory_space<vmem>>, %arg7: memref<16x16xf32, #tpu.memory_space<vmem>>) attributes {dimension_semantics = [#tpu.dimension_semantics<parallel>, #tpu.dimension_semantics<parallel>, #tpu.dimension_semantics<arbitrary>], iteration_bounds = array<i64: 2, 1, 1>, scalar_prefetch = 0 : i64, scratch_operands = 1 : i64, tpu.core_type = #tpu.core_type<tc>, window_params = [{transform_indices = @transform_0, window_bounds = array<i64: 1, 64, 16>}, {pipeline_mode = #tpu.pipeline_mode<synchronous>, transform_indices = @transform_1, window_bounds = array<i64: 1, 16, 64>}, {pipeline_mode = #tpu.pipeline_mode<synchronous>, transform_indices = @transform_2, window_bounds = array<i64: 16, 1>}, {transform_indices = @transform_3, window_bounds = array<i64: 1, 16, 16>}]} {
    %c0_i32 = arith.constant 0 : i32
    %0 = arith.cmpi eq, %arg2, %c0_i32 : i32
    %1 = arith.extui %0 : i1 to i32
    %c0_i32_0 = arith.constant 0 : i32
    %2 = arith.cmpi ne, %1, %c0_i32_0 : i32
    scf.if %2 {
      %cst_11 = arith.constant 0.000000e+00 : f32
      %16 = vector.broadcast %cst_11 : f32 to vector<16x16xf32>
      %c0_12 = arith.constant 0 : index
      %c0_13 = arith.constant 0 : index
      %17 = vector.load %arg7[%c0_12, %c0_13] : memref<16x16xf32, #tpu.memory_space<vmem>>, vector<16x16xf32>
      tpu.vector_store %arg7[%c0_12, %c0_13], %16 {strides = array<i32>} : memref<16x16xf32, #tpu.memory_space<vmem>>, vector<16x16xf32>,
    } else {
    }
    %c0 = arith.constant 0 : index
    %c0_1 = arith.constant 0 : index
    %c0_2 = arith.constant 0 : index
    %3 = vector.load %arg3[%c0, %c0_1, %c0_2] : memref<1x64x16xf32, #tpu.memory_space<vmem>>, vector<1x64x16xf32>
    %4 = vector.shape_cast %3 : vector<1x64x16xf32> to vector<64x16xf32>
    %5 = arith.truncf %4 : vector<64x16xf32> to vector<64x16xbf16>
    %c0_3 = arith.constant 0 : index
    %c0_4 = arith.constant 0 : index
    %6 = vector.load %arg7[%c0_3, %c0_4] : memref<16x16xf32, #tpu.memory_space<vmem>>, vector<16x16xf32>
    %7 = arith.index_cast %arg2 : i32 to index
    %c0_5 = arith.constant 0 : index
    %c0_6 = arith.constant 0 : index
    %8 = vector.load %arg4[%7, %c0_5, %c0_6] : memref<1x16x64xbf16, #tpu.memory_space<vmem>>, vector<1x16x64xbf16>
    %9 = vector.shape_cast %8 : vector<1x16x64xbf16> to vector<16x64xbf16>
    %cst = arith.constant dense<0.000000e+00> : vector<16x16xf32>
    %10 = tpu.matmul %9, %5, %cst {dimension_numbers = #tpu.dot_dimension_numbers<[1], [0], [0], [1], [0, 0, 1, 1], [], []>} : vector<16x64xbf16>, vector<64x16xbf16>, vector<16x16xf32> -> vector<16x16xf32>
    %11 = arith.addf %6, %10 : vector<16x16xf32>
    %c0_7 = arith.constant 0 : index
    %c0_8 = arith.constant 0 : index
    %12 = vector.load %arg7[%c0_7, %c0_8] : memref<16x16xf32, #tpu.memory_space<vmem>>, vector<16x16xf32>
    tpu.vector_store %arg7[%c0_7, %c0_8], %11 {strides = array<i32>} : memref<16x16xf32, #tpu.memory_space<vmem>>, vector<16x16xf32>,
    %c0_i32_9 = arith.constant 0 : i32
    %13 = arith.cmpi eq, %arg2, %c0_i32_9 : i32
    %14 = arith.extui %13 : i1 to i32
    %c0_i32_10 = arith.constant 0 : i32
    %15 = arith.cmpi ne, %14, %c0_i32_10 : i32
    scf.if %15 {
      %c0_11 = arith.constant 0 : index
      %c0_12 = arith.constant 0 : index
      %16 = vector.load %arg7[%c0_11, %c0_12] : memref<16x16xf32, #tpu.memory_space<vmem>>, vector<16x16xf32>
      %c0_13 = arith.constant 0 : index
      %c0_14 = arith.constant 0 : index
      %17 = vector.load %arg5[%c0_13, %c0_14] : memref<16x1xf32, #tpu.memory_space<vmem>>, vector<16x1xf32>
      %18 = vector.broadcast %17 : vector<16x1xf32> to vector<16x16xf32>
      %19 = arith.addf %16, %18 : vector<16x16xf32>
      %20 = tpu.transpose %19, [1, 0] : vector<16x16xf32> -> vector<16x16xf32>
      %21 = arith.truncf %20 : vector<16x16xf32> to vector<16x16xbf16>
      %c0_15 = arith.constant 0 : index
      %c0_16 = arith.constant 0 : index
      %c0_17 = arith.constant 0 : index
      %22 = vector.load %arg6[%c0_15, %c0_16, %c0_17] : memref<1x16x16xbf16, #tpu.memory_space<vmem>>, vector<1x16x16xbf16>
      %23 = vector.shape_cast %22 : vector<1x16x16xbf16> to vector<16x16xbf16>
      %24 = vector.shape_cast %21 : vector<16x16xbf16> to vector<1x16x16xbf16>
      tpu.vector_store %arg6[%c0_15, %c0_16, %c0_17], %24 {strides = array<i32>} : memref<1x16x16xbf16, #tpu.memory_space<vmem>>, vector<1x16x16xbf16>,
    } else {
    }
    return
  }
  func.func @transform_0(%arg0: i32, %arg1: i32, %arg2: i32) -> (i32, i32, i32) {
    %c0_i32 = arith.constant 0 : i32
    return %arg0, %arg2, %arg1 : i32, i32, i32
  }
  func.func @transform_1(%arg0: i32, %arg1: i32, %arg2: i32) -> (i32, i32, i32) {
    %c0_i32 = arith.constant 0 : i32
    %c0_i32_0 = arith.constant 0 : i32
    %c0_i32_1 = arith.constant 0 : i32
    %c0_i32_2 = arith.constant 0 : i32
    return %c0_i32, %c0_i32_0, %c0_i32_1 : i32, i32, i32
  }
  func.func @transform_2(%arg0: i32, %arg1: i32, %arg2: i32) -> (i32, i32) {
    %c0_i32 = arith.constant 0 : i32
    %c0_i32_0 = arith.constant 0 : i32
    %c0_i32_1 = arith.constant 0 : i32
    return %c0_i32, %c0_i32_0 : i32, i32
  }
  func.func @transform_3(%arg0: i32, %arg1: i32, %arg2: i32) -> (i32, i32, i32) {
    %c0_i32 = arith.constant 0 : i32
    %c0_i32_0 = arith.constant 0 : i32
    return %arg0, %arg1, %c0_i32 : i32, i32, i32
  }
}

module attributes {stable_mosaic.version = 11 : i64} {
  func.func @_stack_kernel(%arg0: i32, %arg1: i32, %arg2: memref<1x16x16xbf16, #tpu.memory_space<vmem>>, %arg3: memref<1x16x16xbf16, #tpu.memory_space<vmem>>, %arg4: memref<80x32xbf16, #tpu.memory_space<vmem>>, %arg5: memref<1x32xf32, #tpu.memory_space<vmem>>, %arg6: memref<160x64xbf16, #tpu.memory_space<vmem>>, %arg7: memref<1x64xf32, #tpu.memory_space<vmem>>, %arg8: memref<320x64xbf16, #tpu.memory_space<vmem>>, %arg9: memref<1x64xf32, #tpu.memory_space<vmem>>, %arg10: memref<3x64x1xbf16, #tpu.memory_space<vmem>>, %arg11: memref<1x1xf32, #tpu.memory_space<vmem>>, %arg12: memref<1x16x1xf32, #tpu.memory_space<vmem>>) attributes {dimension_semantics = [#tpu.dimension_semantics<parallel>, #tpu.dimension_semantics<parallel>], iteration_bounds = array<i64: 2, 1>, scalar_prefetch = 0 : i64, scratch_operands = 0 : i64, tpu.core_type = #tpu.core_type<tc>, window_params = [{transform_indices = @transform_0, window_bounds = array<i64: 1, 16, 16>}, {transform_indices = @transform_1, window_bounds = array<i64: 1, 16, 16>}, {pipeline_mode = #tpu.pipeline_mode<synchronous>, transform_indices = @transform_2, window_bounds = array<i64: 80, 32>}, {pipeline_mode = #tpu.pipeline_mode<synchronous>, transform_indices = @transform_3, window_bounds = array<i64: 1, 32>}, {pipeline_mode = #tpu.pipeline_mode<synchronous>, transform_indices = @transform_4, window_bounds = array<i64: 160, 64>}, {pipeline_mode = #tpu.pipeline_mode<synchronous>, transform_indices = @transform_5, window_bounds = array<i64: 1, 64>}, {pipeline_mode = #tpu.pipeline_mode<synchronous>, transform_indices = @transform_6, window_bounds = array<i64: 320, 64>}, {pipeline_mode = #tpu.pipeline_mode<synchronous>, transform_indices = @transform_7, window_bounds = array<i64: 1, 64>}, {pipeline_mode = #tpu.pipeline_mode<synchronous>, transform_indices = @transform_8, window_bounds = array<i64: 3, 64, 1>}, {pipeline_mode = #tpu.pipeline_mode<synchronous>, transform_indices = @transform_9, window_bounds = array<i64: 1, 1>}, {transform_indices = @transform_10, window_bounds = array<i64: 1, 16, 1>}]} {
    %c16_i32 = arith.constant 16 : i32
    %0 = arith.muli %arg1, %c16_i32 : i32
    %c0 = arith.constant 0 : index
    %c0_0 = arith.constant 0 : index
    %c0_1 = arith.constant 0 : index
    %1 = vector.load %arg2[%c0, %c0_0, %c0_1] : memref<1x16x16xbf16, #tpu.memory_space<vmem>>, vector<1x16x16xbf16>
    %2 = vector.shape_cast %1 : vector<1x16x16xbf16> to vector<16x16xbf16>
    %c0_2 = arith.constant 0 : index
    %c0_3 = arith.constant 0 : index
    %c0_4 = arith.constant 0 : index
    %3 = vector.load %arg3[%c0_2, %c0_3, %c0_4] : memref<1x16x16xbf16, #tpu.memory_space<vmem>>, vector<1x16x16xbf16>
    %4 = vector.shape_cast %3 : vector<1x16x16xbf16> to vector<16x16xbf16>
    %5 = vector.extract_strided_slice %4 {offsets = [0, 0], sizes = [14, 16], strides = [1, 1]} : vector<16x16xbf16> to vector<14x16xbf16>
    %6 = tpu.concatenate %2, %5 in 0 : vector<16x16xbf16>, vector<14x16xbf16> -> vector<30x16xbf16>
    %7 = vector.extract_strided_slice %6 {offsets = [0, 0], sizes = [26, 16], strides = [1, 1]} : vector<30x16xbf16> to vector<26x16xbf16>
    %8 = vector.extract_strided_slice %6 {offsets = [1, 0], sizes = [26, 16], strides = [1, 1]} : vector<30x16xbf16> to vector<26x16xbf16>
    %9 = vector.extract_strided_slice %6 {offsets = [2, 0], sizes = [26, 16], strides = [1, 1]} : vector<30x16xbf16> to vector<26x16xbf16>
    %10 = vector.extract_strided_slice %6 {offsets = [3, 0], sizes = [26, 16], strides = [1, 1]} : vector<30x16xbf16> to vector<26x16xbf16>
    %11 = vector.extract_strided_slice %6 {offsets = [4, 0], sizes = [26, 16], strides = [1, 1]} : vector<30x16xbf16> to vector<26x16xbf16>
    %12 = tpu.concatenate %7, %8, %9, %10, %11 in 1 : vector<26x16xbf16>, vector<26x16xbf16>, vector<26x16xbf16>, vector<26x16xbf16>, vector<26x16xbf16> -> vector<26x80xbf16>
    %c0_5 = arith.constant 0 : index
    %c0_6 = arith.constant 0 : index
    %13 = vector.load %arg4[%c0_5, %c0_6] : memref<80x32xbf16, #tpu.memory_space<vmem>>, vector<80x32xbf16>
    %cst = arith.constant dense<0.000000e+00> : vector<26x32xf32>
    %14 = tpu.matmul %12, %13, %cst {dimension_numbers = #tpu.dot_dimension_numbers<[1], [0], [0], [1], [0, 0, 1, 1], [], []>} : vector<26x80xbf16>, vector<80x32xbf16>, vector<26x32xf32> -> vector<26x32xf32>
    %c0_7 = arith.constant 0 : index
    %c0_8 = arith.constant 0 : index
    %15 = vector.load %arg5[%c0_7, %c0_8] : memref<1x32xf32, #tpu.memory_space<vmem>>, vector<1x32xf32>
    %16 = vector.broadcast %15 : vector<1x32xf32> to vector<26x32xf32>
    %17 = arith.addf %14, %16 : vector<26x32xf32>
    %cst_9 = arith.constant 0.000000e+00 : f32
    %18 = vector.broadcast %cst_9 : f32 to vector<26x32xf32>
    %19 = arith.cmpf oge, %17, %18 : vector<26x32xf32>
    %cst_10 = arith.constant 1.000000e-01 : f32
    %20 = vector.broadcast %cst_10 : f32 to vector<26x32xf32>
    %21 = arith.mulf %17, %20 : vector<26x32xf32>
    %22 = arith.select %19, %17, %21 : vector<26x32xi1>, vector<26x32xf32>
    %c-5_i32 = arith.constant -5 : i32
    %23 = arith.addi %0, %c-5_i32 : i32
    %24 = tpu.iota {dimensions = array<i32: 0>} : vector<26x1xi32>
    %25 = vector.broadcast %23 : i32 to vector<26x1xi32>
    %26 = arith.addi %25, %24 : vector<26x1xi32>
    %c0_i32 = arith.constant 0 : i32
    %27 = vector.broadcast %c0_i32 : i32 to vector<26x1xi32>
    %28 = arith.cmpi sge, %26, %27 : vector<26x1xi32>
    %c16_i32_11 = arith.constant 16 : i32
    %29 = vector.broadcast %c16_i32_11 : i32 to vector<26x1xi32>
    %30 = arith.cmpi slt, %26, %29 : vector<26x1xi32>
    %31 = arith.andi %28, %30 : vector<26x1xi1>
    %32 = arith.extui %31 : vector<26x1xi1> to vector<26x1xi32>
    %33 = arith.sitofp %32 : vector<26x1xi32> to vector<26x1xf32>
    %34 = arith.truncf %33 : vector<26x1xf32> to vector<26x1xbf16>
    %35 = arith.truncf %22 : vector<26x32xf32> to vector<26x32xbf16>
    %36 = vector.broadcast %34 : vector<26x1xbf16> to vector<26x32xbf16>
    %37 = arith.mulf %35, %36 : vector<26x32xbf16>
    %38 = vector.extract_strided_slice %37 {offsets = [0, 0], sizes = [22, 32], strides = [1, 1]} : vector<26x32xbf16> to vector<22x32xbf16>
    %39 = vector.extract_strided_slice %37 {offsets = [1, 0], sizes = [22, 32], strides = [1, 1]} : vector<26x32xbf16> to vector<22x32xbf16>
    %40 = vector.extract_strided_slice %37 {offsets = [2, 0], sizes = [22, 32], strides = [1, 1]} : vector<26x32xbf16> to vector<22x32xbf16>
    %41 = vector.extract_strided_slice %37 {offsets = [3, 0], sizes = [22, 32], strides = [1, 1]} : vector<26x32xbf16> to vector<22x32xbf16>
    %42 = vector.extract_strided_slice %37 {offsets = [4, 0], sizes = [22, 32], strides = [1, 1]} : vector<26x32xbf16> to vector<22x32xbf16>
    %43 = tpu.concatenate %38, %39, %40, %41, %42 in 1 : vector<22x32xbf16>, vector<22x32xbf16>, vector<22x32xbf16>, vector<22x32xbf16>, vector<22x32xbf16> -> vector<22x160xbf16>
    %c0_12 = arith.constant 0 : index
    %c0_13 = arith.constant 0 : index
    %44 = vector.load %arg6[%c0_12, %c0_13] : memref<160x64xbf16, #tpu.memory_space<vmem>>, vector<160x64xbf16>
    %cst_14 = arith.constant dense<0.000000e+00> : vector<22x64xf32>
    %45 = tpu.matmul %43, %44, %cst_14 {dimension_numbers = #tpu.dot_dimension_numbers<[1], [0], [0], [1], [0, 0, 1, 1], [], []>} : vector<22x160xbf16>, vector<160x64xbf16>, vector<22x64xf32> -> vector<22x64xf32>
    %c0_15 = arith.constant 0 : index
    %c0_16 = arith.constant 0 : index
    %46 = vector.load %arg7[%c0_15, %c0_16] : memref<1x64xf32, #tpu.memory_space<vmem>>, vector<1x64xf32>
    %47 = vector.broadcast %46 : vector<1x64xf32> to vector<22x64xf32>
    %48 = arith.addf %45, %47 : vector<22x64xf32>
    %cst_17 = arith.constant 0.000000e+00 : f32
    %49 = vector.broadcast %cst_17 : f32 to vector<22x64xf32>
    %50 = arith.cmpf oge, %48, %49 : vector<22x64xf32>
    %cst_18 = arith.constant 1.000000e-01 : f32
    %51 = vector.broadcast %cst_18 : f32 to vector<22x64xf32>
    %52 = arith.mulf %48, %51 : vector<22x64xf32>
    %53 = arith.select %50, %48, %52 : vector<22x64xi1>, vector<22x64xf32>
    %c-3_i32 = arith.constant -3 : i32
    %54 = arith.addi %0, %c-3_i32 : i32
    %55 = tpu.iota {dimensions = array<i32: 0>} : vector<22x1xi32>
    %56 = vector.broadcast %54 : i32 to vector<22x1xi32>
    %57 = arith.addi %56, %55 : vector<22x1xi32>
    %c0_i32_19 = arith.constant 0 : i32
    %58 = vector.broadcast %c0_i32_19 : i32 to vector<22x1xi32>
    %59 = arith.cmpi sge, %57, %58 : vector<22x1xi32>
    %c16_i32_20 = arith.constant 16 : i32
    %60 = vector.broadcast %c16_i32_20 : i32 to vector<22x1xi32>
    %61 = arith.cmpi slt, %57, %60 : vector<22x1xi32>
    %62 = arith.andi %59, %61 : vector<22x1xi1>
    %63 = arith.extui %62 : vector<22x1xi1> to vector<22x1xi32>
    %64 = arith.sitofp %63 : vector<22x1xi32> to vector<22x1xf32>
    %65 = arith.truncf %64 : vector<22x1xf32> to vector<22x1xbf16>
    %66 = arith.truncf %53 : vector<22x64xf32> to vector<22x64xbf16>
    %67 = vector.broadcast %65 : vector<22x1xbf16> to vector<22x64xbf16>
    %68 = arith.mulf %66, %67 : vector<22x64xbf16>
    %69 = vector.extract_strided_slice %68 {offsets = [0, 0], sizes = [18, 64], strides = [1, 1]} : vector<22x64xbf16> to vector<18x64xbf16>
    %70 = vector.extract_strided_slice %68 {offsets = [1, 0], sizes = [18, 64], strides = [1, 1]} : vector<22x64xbf16> to vector<18x64xbf16>
    %71 = vector.extract_strided_slice %68 {offsets = [2, 0], sizes = [18, 64], strides = [1, 1]} : vector<22x64xbf16> to vector<18x64xbf16>
    %72 = vector.extract_strided_slice %68 {offsets = [3, 0], sizes = [18, 64], strides = [1, 1]} : vector<22x64xbf16> to vector<18x64xbf16>
    %73 = vector.extract_strided_slice %68 {offsets = [4, 0], sizes = [18, 64], strides = [1, 1]} : vector<22x64xbf16> to vector<18x64xbf16>
    %74 = tpu.concatenate %69, %70, %71, %72, %73 in 1 : vector<18x64xbf16>, vector<18x64xbf16>, vector<18x64xbf16>, vector<18x64xbf16>, vector<18x64xbf16> -> vector<18x320xbf16>
    %c0_21 = arith.constant 0 : index
    %c0_22 = arith.constant 0 : index
    %75 = vector.load %arg8[%c0_21, %c0_22] : memref<320x64xbf16, #tpu.memory_space<vmem>>, vector<320x64xbf16>
    %cst_23 = arith.constant dense<0.000000e+00> : vector<18x64xf32>
    %76 = tpu.matmul %74, %75, %cst_23 {dimension_numbers = #tpu.dot_dimension_numbers<[1], [0], [0], [1], [0, 0, 1, 1], [], []>} : vector<18x320xbf16>, vector<320x64xbf16>, vector<18x64xf32> -> vector<18x64xf32>
    %c0_24 = arith.constant 0 : index
    %c0_25 = arith.constant 0 : index
    %77 = vector.load %arg9[%c0_24, %c0_25] : memref<1x64xf32, #tpu.memory_space<vmem>>, vector<1x64xf32>
    %78 = vector.broadcast %77 : vector<1x64xf32> to vector<18x64xf32>
    %79 = arith.addf %76, %78 : vector<18x64xf32>
    %cst_26 = arith.constant 0.000000e+00 : f32
    %80 = vector.broadcast %cst_26 : f32 to vector<18x64xf32>
    %81 = arith.cmpf oge, %79, %80 : vector<18x64xf32>
    %cst_27 = arith.constant 1.000000e-01 : f32
    %82 = vector.broadcast %cst_27 : f32 to vector<18x64xf32>
    %83 = arith.mulf %79, %82 : vector<18x64xf32>
    %84 = arith.select %81, %79, %83 : vector<18x64xi1>, vector<18x64xf32>
    %c-1_i32 = arith.constant -1 : i32
    %85 = arith.addi %0, %c-1_i32 : i32
    %86 = tpu.iota {dimensions = array<i32: 0>} : vector<18x1xi32>
    %87 = vector.broadcast %85 : i32 to vector<18x1xi32>
    %88 = arith.addi %87, %86 : vector<18x1xi32>
    %c0_i32_28 = arith.constant 0 : i32
    %89 = vector.broadcast %c0_i32_28 : i32 to vector<18x1xi32>
    %90 = arith.cmpi sge, %88, %89 : vector<18x1xi32>
    %c16_i32_29 = arith.constant 16 : i32
    %91 = vector.broadcast %c16_i32_29 : i32 to vector<18x1xi32>
    %92 = arith.cmpi slt, %88, %91 : vector<18x1xi32>
    %93 = arith.andi %90, %92 : vector<18x1xi1>
    %94 = arith.extui %93 : vector<18x1xi1> to vector<18x1xi32>
    %95 = arith.sitofp %94 : vector<18x1xi32> to vector<18x1xf32>
    %96 = arith.truncf %95 : vector<18x1xf32> to vector<18x1xbf16>
    %97 = arith.truncf %84 : vector<18x64xf32> to vector<18x64xbf16>
    %98 = vector.broadcast %96 : vector<18x1xbf16> to vector<18x64xbf16>
    %99 = arith.mulf %97, %98 : vector<18x64xbf16>
    %100 = vector.extract_strided_slice %99 {offsets = [0, 0], sizes = [16, 64], strides = [1, 1]} : vector<18x64xbf16> to vector<16x64xbf16>
    %c0_30 = arith.constant 0 : index
    %c0_31 = arith.constant 0 : index
    %c0_32 = arith.constant 0 : index
    %101 = vector.load %arg10[%c0_30, %c0_31, %c0_32] : memref<3x64x1xbf16, #tpu.memory_space<vmem>>, vector<1x64x1xbf16>
    %102 = vector.shape_cast %101 : vector<1x64x1xbf16> to vector<64x1xbf16>
    %cst_33 = arith.constant dense<0.000000e+00> : vector<16x1xf32>
    %103 = tpu.matmul %100, %102, %cst_33 {dimension_numbers = #tpu.dot_dimension_numbers<[1], [0], [0], [1], [0, 0, 1, 1], [], []>} : vector<16x64xbf16>, vector<64x1xbf16>, vector<16x1xf32> -> vector<16x1xf32>
    %104 = vector.extract_strided_slice %99 {offsets = [1, 0], sizes = [16, 64], strides = [1, 1]} : vector<18x64xbf16> to vector<16x64xbf16>
    %c1 = arith.constant 1 : index
    %c0_34 = arith.constant 0 : index
    %c0_35 = arith.constant 0 : index
    %105 = vector.load %arg10[%c1, %c0_34, %c0_35] : memref<3x64x1xbf16, #tpu.memory_space<vmem>>, vector<1x64x1xbf16>
    %106 = vector.shape_cast %105 : vector<1x64x1xbf16> to vector<64x1xbf16>
    %cst_36 = arith.constant dense<0.000000e+00> : vector<16x1xf32>
    %107 = tpu.matmul %104, %106, %cst_36 {dimension_numbers = #tpu.dot_dimension_numbers<[1], [0], [0], [1], [0, 0, 1, 1], [], []>} : vector<16x64xbf16>, vector<64x1xbf16>, vector<16x1xf32> -> vector<16x1xf32>
    %108 = arith.addf %103, %107 : vector<16x1xf32>
    %109 = vector.extract_strided_slice %99 {offsets = [2, 0], sizes = [16, 64], strides = [1, 1]} : vector<18x64xbf16> to vector<16x64xbf16>
    %c2 = arith.constant 2 : index
    %c0_37 = arith.constant 0 : index
    %c0_38 = arith.constant 0 : index
    %110 = vector.load %arg10[%c2, %c0_37, %c0_38] : memref<3x64x1xbf16, #tpu.memory_space<vmem>>, vector<1x64x1xbf16>
    %111 = vector.shape_cast %110 : vector<1x64x1xbf16> to vector<64x1xbf16>
    %cst_39 = arith.constant dense<0.000000e+00> : vector<16x1xf32>
    %112 = tpu.matmul %109, %111, %cst_39 {dimension_numbers = #tpu.dot_dimension_numbers<[1], [0], [0], [1], [0, 0, 1, 1], [], []>} : vector<16x64xbf16>, vector<64x1xbf16>, vector<16x1xf32> -> vector<16x1xf32>
    %113 = arith.addf %108, %112 : vector<16x1xf32>
    %c0_40 = arith.constant 0 : index
    %c0_41 = arith.constant 0 : index
    %114 = vector.load %arg11[%c0_40, %c0_41] : memref<1x1xf32, #tpu.memory_space<vmem>>, vector<1x1xf32>
    %115 = vector.broadcast %114 : vector<1x1xf32> to vector<16x1xf32>
    %116 = arith.addf %113, %115 : vector<16x1xf32>
    %c0_42 = arith.constant 0 : index
    %c0_43 = arith.constant 0 : index
    %c0_44 = arith.constant 0 : index
    %117 = vector.load %arg12[%c0_42, %c0_43, %c0_44] : memref<1x16x1xf32, #tpu.memory_space<vmem>>, vector<1x16x1xf32>
    %118 = vector.shape_cast %117 : vector<1x16x1xf32> to vector<16x1xf32>
    %119 = vector.shape_cast %116 : vector<16x1xf32> to vector<1x16x1xf32>
    tpu.vector_store %arg12[%c0_42, %c0_43, %c0_44], %119 {strides = array<i32>} : memref<1x16x1xf32, #tpu.memory_space<vmem>>, vector<1x16x1xf32>,
    return
  }
  func.func @transform_0(%arg0: i32, %arg1: i32) -> (i32, i32, i32) {
    %c0_i32 = arith.constant 0 : i32
    %c0_i32_0 = arith.constant 0 : i32
    return %arg0, %arg1, %c0_i32 : i32, i32, i32
  }
  func.func @transform_1(%arg0: i32, %arg1: i32) -> (i32, i32, i32) {
    %c1_i32 = arith.constant 1 : i32
    %0 = arith.addi %arg1, %c1_i32 : i32
    %c1_i32_0 = arith.constant 1 : i32
    %1 = arith.muli %0, %c1_i32_0 : i32
    %c0_i32 = arith.constant 0 : i32
    %c0_i32_1 = arith.constant 0 : i32
    return %arg0, %1, %c0_i32 : i32, i32, i32
  }
  func.func @transform_2(%arg0: i32, %arg1: i32) -> (i32, i32) {
    %c0_i32 = arith.constant 0 : i32
    %c0_i32_0 = arith.constant 0 : i32
    %c0_i32_1 = arith.constant 0 : i32
    return %c0_i32, %c0_i32_0 : i32, i32
  }
  func.func @transform_3(%arg0: i32, %arg1: i32) -> (i32, i32) {
    %c0_i32 = arith.constant 0 : i32
    %c0_i32_0 = arith.constant 0 : i32
    %c0_i32_1 = arith.constant 0 : i32
    return %c0_i32, %c0_i32_0 : i32, i32
  }
  func.func @transform_4(%arg0: i32, %arg1: i32) -> (i32, i32) {
    %c0_i32 = arith.constant 0 : i32
    %c0_i32_0 = arith.constant 0 : i32
    %c0_i32_1 = arith.constant 0 : i32
    return %c0_i32, %c0_i32_0 : i32, i32
  }
  func.func @transform_5(%arg0: i32, %arg1: i32) -> (i32, i32) {
    %c0_i32 = arith.constant 0 : i32
    %c0_i32_0 = arith.constant 0 : i32
    %c0_i32_1 = arith.constant 0 : i32
    return %c0_i32, %c0_i32_0 : i32, i32
  }
  func.func @transform_6(%arg0: i32, %arg1: i32) -> (i32, i32) {
    %c0_i32 = arith.constant 0 : i32
    %c0_i32_0 = arith.constant 0 : i32
    %c0_i32_1 = arith.constant 0 : i32
    return %c0_i32, %c0_i32_0 : i32, i32
  }
  func.func @transform_7(%arg0: i32, %arg1: i32) -> (i32, i32) {
    %c0_i32 = arith.constant 0 : i32
    %c0_i32_0 = arith.constant 0 : i32
    %c0_i32_1 = arith.constant 0 : i32
    return %c0_i32, %c0_i32_0 : i32, i32
  }
  func.func @transform_8(%arg0: i32, %arg1: i32) -> (i32, i32, i32) {
    %c0_i32 = arith.constant 0 : i32
    %c0_i32_0 = arith.constant 0 : i32
    %c0_i32_1 = arith.constant 0 : i32
    %c0_i32_2 = arith.constant 0 : i32
    return %c0_i32, %c0_i32_0, %c0_i32_1 : i32, i32, i32
  }
  func.func @transform_9(%arg0: i32, %arg1: i32) -> (i32, i32) {
    %c0_i32 = arith.constant 0 : i32
    %c0_i32_0 = arith.constant 0 : i32
    %c0_i32_1 = arith.constant 0 : i32
    return %c0_i32, %c0_i32_0 : i32, i32
  }
  func.func @transform_10(%arg0: i32, %arg1: i32) -> (i32, i32, i32) {
    %c0_i32 = arith.constant 0 : i32
    %c0_i32_0 = arith.constant 0 : i32
    return %arg0, %arg1, %c0_i32 : i32, i32, i32
  }
}

</mosaic_0001>

<llo_original>
// kernel: wavlm_discriminator_forward.2
$region0: #{wavlm_discriminator_forward.2}
  #allocation0 [shape = 'u32[]', space=smem, size = 0x4, offset = 0x4, fixed_abs, tag = 'smem constant byte address 0x4 - core index']
  #allocation1 [shape = 'u32[144,128]{1,0:T(1,128)}', space=vmem, size = 0x12000, scoped, tag = 'internal scratch']
  #allocation2 [shape = 'f32[16,16]{1,0:T(8,128)}', space=vmem, size = 0x2000, scoped, tag = 'scratch operand']
  %s0 = inlined_call_operand.vmem [shape: f32[2,64,16], index: 0, kind: input, shape index: {}]
  %s1 = inlined_call_operand.vmem [shape: bf16[1,16,64], index: 1, kind: input, shape index: {}]
  %s2 = inlined_call_operand.vmem [shape: f32[16,1], index: 2, kind: input, shape index: {}]
  %s3 = inlined_call_operand.vmem [shape: bf16[2,16,16], index: 3, kind: output, shape index: {}]
  %s4 = sld [smem:[#allocation0]]
  $region53: #{wavlm_discriminator_forward.2} parent=0
    _
  %s6 = ssub.s32 1, %s4
  %s7 = scalar_select 0, %s6, %s4
  loop: start=0, step=1, limit=4
  $region2: #{wavlm_discriminator_forward.2} parent=0 // loop_pre_header
    _
  $region3: #{wavlm_discriminator_forward.2} parent=0 // loop_header
    %s9 = sphi 0, %s13
    %p10 = scmp.ge.s32.totalorder %s9, 4
    %s16 = sphi 0, %s35
    %s17 = sphi 0, %s31
    %s18 = sphi 0, %s27
    %s19 = sphi 0, %s16
    %s20 = sphi 0, %s17
    %s21 = sphi 0, %s18
    %s22 = sphi 0, %s19
    %s23 = sphi 0, %s20
    %s24 = sphi 0, %s21
    %s42 = sphi 0, %s44
    %s45 = sphi 0, %s42
    %s46 = sphi 0, %s45
    %s62 = sphi 0, %s46
    %s66 = sphi 0, %s66
    %s68 = sphi 0, %s66
    %s69 = sphi 0, %s68
    %s83 = sphi 0, %s69
    %s87 = sphi 0, %s87
    %s89 = sphi 0, %s87
    %s90 = sphi 0, %s89
    %s104 = sphi 0, %s90
    %s112 = sphi 0, %s114
    %s115 = sphi 0, %s112
    %s116 = sphi 0, %s115
    %s132 = sphi 0, %s116
  $region4: #{wavlm_discriminator_forward.2} parent=0 // loop_header_branch
    %12 = sbr.rel (%p10) target = $region8
  $region5: #{wavlm_discriminator_forward.2} parent=0 // loop_body
    %s14 = ssub.s32 %s9, 1
    %s15 = ssub.s32 %s9, 2
    %s25 = sadd.s32 1, %s18
    %p26 = scmp.ge.s32.totalorder %s25, 1
    %s27 = scalar_select %p26, 0, %s25
    %s28 = sadd.s32 1, %s17
    %s29 = scalar_select %p26, %s28, %s17
    %p30 = scmp.ge.s32.totalorder %s29, 1
    %s31 = scalar_select %p30, 0, %s29
    %s32 = sadd.s32 1, %s16
    %s33 = scalar_select %p30, %s32, %s16
    %p34 = scmp.ge.s32.totalorder %s33, 2
    %s35 = scalar_select %p34, 0, %s33
    %s36 = ssub.s32 %s16, %s35
    %s37 = ssub.s32 %s18, %s27
    %s38 = sor.u32 %s36, %s37
    %s39 = ssub.s32 %s17, %s31
    %s40 = sor.u32 %s38, %s39
    %p41 = scmp.eq.s32.totalorder %s40, 0
    %s43 = sadd.s32 %s42, 1
    %s44 = scalar_select %p41, %s42, %s43
    %p47 = pneg %p41
    %p48 = scmp.eq.s32.totalorder %s9, 1
    %p49 = por %p47, %p48
    %p50 = scmp.ne.s32.totalorder %s42, %s45
    %p51 = scmp.eq.s32.totalorder %s9, 0
    %p52 = por %p50, %p51
    %p53 = scmp.ne.s32.totalorder %s42, %s45
    %p54 = scmp.eq.s32.totalorder %s14, 1
    %p55 = por %p53, %p54
    %p56 = scmp.ne.s32.totalorder %s45, %s46
    %p57 = scmp.eq.s32.totalorder %s14, 0
    %p58 = por %p56, %p57
    %p59 = scmp.ne.s32.totalorder %s45, %s46
    %p60 = scmp.eq.s32.totalorder %s15, 1
    %p61 = por %p59, %p60
    %p63 = scmp.ne.s32.totalorder %s46, %s62
    %p64 = scmp.eq.s32.totalorder %s15, 0
    %p65 = por %p63, %p64
    %s67 = sadd.s32 %s66, 1
    %p70 = scmp.eq.s32.totalorder %s9, 1
    %p71 = scmp.ne.s32.totalorder %s66, %s68
    %p72 = scmp.eq.s32.totalorder %s9, 0
    %p73 = por %p71, %p72
    %p74 = scmp.ne.s32.totalorder %s66, %s68
    %p75 = scmp.eq.s32.totalorder %s14, 1
    %p76 = por %p74, %p75
    %p77 = scmp.ne.s32.totalorder %s68, %s69
    %p78 = scmp.eq.s32.totalorder %s14, 0
    %p79 = por %p77, %p78
    %p80 = scmp.ne.s32.totalorder %s68, %s69
    %p81 = scmp.eq.s32.totalorder %s15, 1
    %p82 = por %p80, %p81
    %p84 = scmp.ne.s32.totalorder %s69, %s83
    %p85 = scmp.eq.s32.totalorder %s15, 0
    %p86 = por %p84, %p85
    %s88 = sadd.s32 %s87, 1
    %p91 = scmp.eq.s32.totalorder %s9, 1
    %p92 = scmp.ne.s32.totalorder %s87, %s89
    %p93 = scmp.eq.s32.totalorder %s9, 0
    %p94 = por %p92, %p93
    %p95 = scmp.ne.s32.totalorder %s87, %s89
    %p96 = scmp.eq.s32.totalorder %s14, 1
    %p97 = por %p95, %p96
    %p98 = scmp.ne.s32.totalorder %s89, %s90
    %p99 = scmp.eq.s32.totalorder %s14, 0
    %p100 = por %p98, %p99
    %p101 = scmp.ne.s32.totalorder %s89, %s90
    %p102 = scmp.eq.s32.totalorder %s15, 1
    %p103 = por %p101, %p102
    %p105 = scmp.ne.s32.totalorder %s90, %s104
    %p106 = scmp.eq.s32.totalorder %s15, 0
    %p107 = por %p105, %p106
    %s108 = ssub.s32 %s16, %s35
    %s109 = ssub.s32 %s17, %s31
    %s110 = sor.u32 %s108, %s109
    %p111 = scmp.eq.s32.totalorder %s110, 0
    %s113 = sadd.s32 %s112, 1
    %s114 = scalar_select %p111, %s112, %s113
    %p117 = pneg %p111
    %p118 = scmp.eq.s32.totalorder %s9, 1
    %p119 = por %p117, %p118
    %p120 = scmp.ne.s32.totalorder %s112, %s115
    %p121 = scmp.eq.s32.totalorder %s9, 0
    %p122 = por %p120, %p121
    %p123 = scmp.ne.s32.totalorder %s112, %s115
    %p124 = scmp.eq.s32.totalorder %s14, 1
    %p125 = por %p123, %p124
    %p126 = scmp.ne.s32.totalorder %s115, %s116
    %p127 = scmp.eq.s32.totalorder %s14, 0
    %p128 = por %p126, %p127
    %p129 = scmp.ne.s32.totalorder %s115, %s116
    %p130 = scmp.eq.s32.totalorder %s15, 1
    %p131 = por %p129, %p130
    %p133 = scmp.ne.s32.totalorder %s116, %s132
    %p134 = scmp.eq.s32.totalorder %s15, 0
    %p135 = por %p133, %p134
    %p136 = scmp.le.s32.totalorder 1, %s9
    %p137 = scmp.lt.s32.totalorder %s9, 3
    %p138 = pnand %p136, %p137
    %p139 = pneg %p138
    // Predicated region
    $region9: #{wavlm_discriminator_forward.2} parent=5 // pred_check
      _
    $region10: #{wavlm_discriminator_forward.2} parent=5 // pred_check_branch
      %141 = sbr.rel (%p138) target = $region12
    $region11: #{wavlm_discriminator_forward.2} parent=5 // pred_region
      %s142 = ssub.s32 %s9, 1
      // Predicated region
      $region13: #{wavlm_discriminator_forward.2} parent=11 // pred_check
        %p143 = pneg %p79
      $region14: #{wavlm_discriminator_forward.2} parent=11 // pred_check_branch
        %145 = sbr.rel (%p143) target = $region16
      $region15: #{wavlm_discriminator_forward.2} parent=11 // pred_region
        _
      $region16: #{wavlm_discriminator_forward.2} parent=11 // pred_fallthru
        _
      // Predicated region
      $region17: #{wavlm_discriminator_forward.2} parent=11 // pred_check
        %p146 = pneg %p100
      $region18: #{wavlm_discriminator_forward.2} parent=11 // pred_check_branch
        %148 = sbr.rel (%p146) target = $region20
      $region19: #{wavlm_discriminator_forward.2} parent=11 // pred_region
        _
      $region20: #{wavlm_discriminator_forward.2} parent=11 // pred_fallthru
        _
    $region12: #{wavlm_discriminator_forward.2} parent=5 // pred_fallthru
      _
    %p149 = scmp.lt.s32.totalorder %s9, 2
    // Predicated region
    $region21: #{wavlm_discriminator_forward.2} parent=5 // pred_check
      %p150 = pneg %p149
    $region22: #{wavlm_discriminator_forward.2} parent=5 // pred_check_branch
      %152 = sbr.rel (%p150) target = $region24
    $region23: #{wavlm_discriminator_forward.2} parent=5 // pred_region
      // Predicated region
      $region25: #{wavlm_discriminator_forward.2} parent=23 // pred_check
        %p153 = pneg %p52
      $region26: #{wavlm_discriminator_forward.2} parent=23 // pred_check_branch
        %155 = sbr.rel (%p153) target = $region28
      $region27: #{wavlm_discriminator_forward.2} parent=23 // pred_region
        %s156 = smul.u32 8, %s18
        %p157 = scmp.lt.s32.totalorder %s16, 1
        %s158 = scalar_select %p157, %s16, 1
        %p159 = scmp.lt.s32.totalorder %s156, 7
        %s160 = scalar_select %p159, %s156, 7
        %p161 = scmp.lt.s32.totalorder %s17, 0
        %s162 = scalar_select %p161, %s17, 0
        %s163 = sadd.s32 %s162, %s160
        %s164 = smul.addr %s158, 8
        %s165 = sadd.s32 %s163, %s164
        %s166 = smul.addr %s165, 8
        %s167 = scalar_lea.vmem %s0, %s166
        %s168 = smul.u32 8, %s18
      $region28: #{wavlm_discriminator_forward.2} parent=23 // pred_fallthru
        _
    $region24: #{wavlm_discriminator_forward.2} parent=5 // pred_fallthru
      _
    %p169 = scmp.le.s32.totalorder 1, %s9
    %p170 = scmp.lt.s32.totalorder %s9, 3
    %p171 = pnand %p169, %p170
    %p172 = pneg %p171
    // Predicated region
    $region29: #{wavlm_discriminator_forward.2} parent=5 // pred_check
      _
    $region30: #{wavlm_discriminator_forward.2} parent=5 // pred_check_branch
      %174 = sbr.rel (%p171) target = $region32
    $region31: #{wavlm_discriminator_forward.2} parent=5 // pred_region
      %s175 = ssub.s32 %s9, 1
      %s176 = smul.u32 8, %s21
      %p177 = scmp.lt.s32.totalorder %s19, 1
      %s178 = scalar_select %p177, %s19, 1
      %p179 = scmp.lt.s32.totalorder %s176, 7
      %s180 = scalar_select %p179, %s176, 7
      %p181 = scmp.lt.s32.totalorder %s20, 0
      %s182 = scalar_select %p181, %s20, 0
      %s183 = sadd.s32 %s182, %s180
      %s184 = smul.addr %s178, 8
      %s185 = sadd.s32 %s183, %s184
      %s186 = smul.addr %s185, 8
      %s187 = scalar_lea.vmem %s0, %s186
      %p188 = pneg %p58
      %p189 = pneg %p55
      %p190 = pneg %p79
      %p191 = pneg %p76
      %p192 = pneg %p100
      %p193 = pneg %p97
      %p194 = pneg %p128
      %p195 = pneg %p125
      %s196 = smul.u32 2, %s20
      %p197 = scmp.lt.s32.totalorder %s19, 1
      %s198 = scalar_select %p197, %s19, 1
      %p199 = scmp.lt.s32.totalorder %s196, 1
      %s200 = scalar_select %p199, %s196, 1
      %s201 = smul.addr %s198, 2
      %s202 = sadd.s32 %s200, %s201
      %s203 = smul.addr %s202, 4
      %s204 = scalar_lea.vmem %s3, %s203
      %s205 = smul.u32 8, %s21
      %p206 = scmp.lt.s32.totalorder %s19, 1
      %s207 = scalar_select %p206, %s19, 1
      %p208 = scmp.lt.s32.totalorder %s205, 7
      %s209 = scalar_select %p208, %s205, 7
      %p210 = scmp.lt.s32.totalorder %s20, 0
      %s211 = scalar_select %p210, %s20, 0
      %s212 = sadd.s32 %s211, %s209
      %s213 = smul.addr %s207, 8
      %s214 = sadd.s32 %s212, %s213
      %s215 = smul.addr %s214, 8
      %s216 = scalar_lea.vmem %s0, %s215
      %s217 = smul.u32 8, %s21
      %s218 = smul.u32 2, %s20
      %p219 = scmp.lt.s32.totalorder %s19, 1
      %s220 = scalar_select %p219, %s19, 1
      %p221 = scmp.lt.s32.totalorder %s218, 1
      %s222 = scalar_select %p221, %s218, 1
      %s223 = smul.addr %s220, 2
      %s224 = sadd.s32 %s222, %s223
      %s225 = smul.addr %s224, 4
      %s226 = scalar_lea.vmem %s3, %s225
      %s227 = smul.u32 2, %s20
      %p229 = scmp.eq.s32.totalorder %s21, 0
      // Predicated region
      $region33: #{wavlm_discriminator_forward.2} parent=31 // pred_check
        %p230 = pneg %p229
      $region34: #{wavlm_discriminator_forward.2} parent=31 // pred_check_branch
        %232 = sbr.rel (%p230) target = $region36
      $region35: #{wavlm_discriminator_forward.2} parent=31 // pred_region
        %vm233 = vcmask 130048
        %234 = vst.msk [vmem:[#allocation2] sm:$0xff] %vm233, 0.0
        %235 = vst.msk [vmem:[#allocation2 + $0x8] sm:$0xff] %vm233, 0.0
      $region36: #{wavlm_discriminator_forward.2} parent=31 // pred_fallthru
        _
      %v236 = vld [vmem:[%s216] sm:$0xff]
      %v237 = vld [vmem:[%s216 + $0x8] sm:$0xff]
      %v238 = vld [vmem:[%s216 + $0x10] sm:$0xff]
      %v239 = vld [vmem:[%s216 + $0x18] sm:$0xff]
      %v240 = vld [vmem:[%s216 + $0x20] sm:$0xff]
      %v241 = vld [vmem:[%s216 + $0x28] sm:$0xff]
      %v242 = vld [vmem:[%s216 + $0x30] sm:$0xff]
      %v243 = vld [vmem:[%s216 + $0x38] sm:$0xff]
      %v244 = vpack.c.bf16 %v237, %v236
      %v245 = vpack.c.bf16 %v239, %v238
      %v246 = vpack.c.bf16 %v241, %v240
      %v247 = vpack.c.bf16 %v243, %v242
      %v248 = vld [vmem:[#allocation2] sm:$0xff]
      %v249 = vld [vmem:[#allocation2 + $0x8] sm:$0xff]
      %s250 = smul.u32 %s21, 2
      %s251 = smul.addr %s250, 4
      %s252 = scalar_lea.vmem %s1, %s251
      %v253 = vld [vmem:[%s252] sm:$0xf]
      %v254 = vld [vmem:[%s252 + $0x4] sm:$0xf]
      %v257 = vunpack.c.l.b16 %v253
      %v258 = vunpack.c.l.b16 %v254
      %v259 = vpack.c.b16 %v258, %v257
      %vm260 = vcmask 523264
      %v262 = vsel %vm260, %v259, 0
      %264 = vmatprep.subr.bf16.mxu0 0
      %265 = vmatpush1.bf16.msra.mxu0 %v244
      %266 = vmatprep.subr.bf16.mxu0 0
      %267 = vmatpush1.bf16.msra.mxu0 %v245
      %268 = vmatprep.subr.bf16.mxu0 0
      %269 = vmatpush1.bf16.msra.mxu0 %v246
      %270 = vmatprep.subr.bf16.mxu0 0
      %271 = vmatpush1.bf16.msra.mxu0 %v247
      %272 = vmatprep.subr.bf16.mxu0 0
      %273 = vmatpush1.bf16.msra.mxu0 0
      %274 = vmatprep.subr.bf16.mxu0 0
      %275 = vmatpush1.bf16.msra.mxu0 0
      %276 = vmatprep.subr.bf16.mxu0 0
      %277 = vmatpush1.bf16.msra.mxu0 0
      %278 = vmatprep.subr.bf16.mxu0 0
      %279 = vmatpush1.bf16.msra.mxu0 0
      %280 = vmatprep.subr.bf16.mxu0 0
      %281 = vmatpush1.bf16.msra.mxu0 0
      %282 = vmatprep.subr.bf16.mxu0 0
      %283 = vmatpush1.bf16.msra.mxu0 0
      %284 = vmatprep.subr.bf16.mxu0 0
      %285 = vmatpush1.bf16.msra.mxu0 0
      %286 = vmatprep.subr.bf16.mxu0 0
      %287 = vmatpush1.bf16.msra.mxu0 0
      %288 = vmatprep.subr.bf16.mxu0 0
      %289 = vmatpush1.bf16.msra.mxu0 0
      %290 = vmatprep.subr.bf16.mxu0 0
      %291 = vmatpush1.bf16.msra.mxu0 0
      %292 = vmatprep.subr.bf16.mxu0 0
      %293 = vmatpush1.bf16.msra.mxu0 0
      %294 = vmatprep.subr.bf16.mxu0 0
      %295 = vmatpush1.bf16.msra.mxu0 0
      %296 = vmatprep.mubr.bf16.mxu0 0
      %297 = vmatmul.mubr.bf16.gmra.mrb[0].mxu0 %v262
      %v298 = vpop.f32.mrb[0].mxu0
      %v299 = vadd.f32 0.0, %v298
      %v300 = vpop.f32.mrb[0].mxu0
      %v301 = vpop.f32.mrb[0].mxu0
      %v302 = vadd.f32 0.0, %v301
      %v303 = vpop.f32.mrb[0].mxu0
      %304 = vdwg.mxu0
      %v305 = vadd.f32 %v248, %v299
      %v306 = vadd.f32 %v249, %v302
      %vm307 = vcmask 130048
      %308 = vst.msk [vmem:[#allocation2] sm:$0xff] %vm307, %v305
      %309 = vst.msk [vmem:[#allocation2 + $0x8] sm:$0xff] %vm307, %v306
      // Predicated region
      $region37: #{wavlm_discriminator_forward.2} parent=31 // pred_check
        %p310 = pneg %p229
      $region38: #{wavlm_discriminator_forward.2} parent=31 // pred_check_branch
        %312 = sbr.rel (%p310) target = $region40
      $region39: #{wavlm_discriminator_forward.2} parent=31 // pred_region
        %v313 = vld [vmem:[#allocation2] sm:$0xff]
        %v314 = vld [vmem:[#allocation2 + $0x8] sm:$0xff]
        %v315 = vld [vmem:[%s2] sm:$0xff]
        %v316 = vld [vmem:[%s2 + $0x8] sm:$0xff]
        %318 = vset.pattern.permute.xlu0 0
        %319 = vperm.xlu0 %318, %v315
        %v320 = vpop.permute.xlu0 %319
        %323 = vset.pattern.permute.xlu0 0
        %324 = vperm.xlu0 %323, %v316
        %v325 = vpop.permute.xlu0 %324
        %v327 = vadd.f32 %v313, %v320
        %v328 = vadd.f32 %v314, %v325
        %329 = vxpose.xlu0.b32.start [1/16] %v327, 128
        %330 = vxpose.xlu0.b32.cont [2/16] %v328, 128
        %331 = vxpose.xlu0.b32.cont [3/16] 0.0, 128
        %332 = vxpose.xlu0.b32.cont [4/16] 0.0, 128
        %333 = vxpose.xlu0.b32.cont [5/16] 0.0, 128
        %334 = vxpose.xlu0.b32.cont [6/16] 0.0, 128
        %335 = vxpose.xlu0.b32.cont [7/16] 0.0, 128
        %336 = vxpose.xlu0.b32.cont [8/16] 0.0, 128
        %337 = vxpose.xlu0.b32.cont [9/16] 0.0, 128
        %338 = vxpose.xlu0.b32.cont [10/16] 0.0, 128
        %339 = vxpose.xlu0.b32.cont [11/16] 0.0, 128
        %340 = vxpose.xlu0.b32.cont [12/16] 0.0, 128
        %341 = vxpose.xlu0.b32.cont [13/16] 0.0, 128
        %342 = vxpose.xlu0.b32.cont [14/16] 0.0, 128
        %343 = vxpose.xlu0.b32.cont [15/16] 0.0, 128
        %344 = vxpose.xlu0.b32.end [16/16] 0.0, 128
        %v345 = vpop.trf.xlu0
        %v346 = vpop.trf.xlu0
        %v347 = vpop.trf.xlu0
        %v348 = vpop.trf.xlu0
        %v349 = vpop.trf.xlu0
        %v350 = vpop.trf.xlu0
        %v351 = vpop.trf.xlu0
        %v352 = vpop.trf.xlu0
        %v353 = vpop.trf.xlu0
        %v354 = vpop.trf.xlu0
        %v355 = vpop.trf.xlu0
        %v356 = vpop.trf.xlu0
        %v357 = vpop.trf.xlu0
        %v358 = vpop.trf.xlu0
        %v359 = vpop.trf.xlu0
        %v360 = vpop.trf.xlu0
        %v361 = vpack.c.bf16 %v346, %v345
        %v363 = vunpack.c.l.b16 %v361
        %v364 = vunpack.c.h.b16 %v361
        %v365 = vpack.c.b16 %v363, %v363
        %v366 = vpack.c.b16 %v364, %v364
        %vm369 = vcmask 125952
        %370 = vst.msk [vmem:[%s226] sm:$0xf] %vm369, %v365
        %371 = vst.msk [vmem:[%s226 + $0x4] sm:$0xf] %vm369, %v366
      $region40: #{wavlm_discriminator_forward.2} parent=31 // pred_fallthru
        _
      %s372 = smul.u32 2, %s20
      %p373 = scmp.lt.s32.totalorder %s19, 1
      %s374 = scalar_select %p373, %s19, 1
      %p375 = scmp.lt.s32.totalorder %s372, 1
      %s376 = scalar_select %p375, %s372, 1
      %s377 = smul.addr %s374, 2
      %s378 = sadd.s32 %s376, %s377
      %s379 = smul.addr %s378, 4
      %s380 = scalar_lea.vmem %s3, %s379
      // Predicated region
      $region41: #{wavlm_discriminator_forward.2} parent=31 // pred_check
        %p381 = pneg %p125
      $region42: #{wavlm_discriminator_forward.2} parent=31 // pred_check_branch
        %383 = sbr.rel (%p381) target = $region44
      $region43: #{wavlm_discriminator_forward.2} parent=31 // pred_region
        %s384 = smul.u32 2, %s20
      $region44: #{wavlm_discriminator_forward.2} parent=31 // pred_fallthru
        _
    $region32: #{wavlm_discriminator_forward.2} parent=5 // pred_fallthru
      _
    %p385 = scmp.le.s32.totalorder 2, %s9
    // Predicated region
    $region45: #{wavlm_discriminator_forward.2} parent=5 // pred_check
      %p386 = pneg %p385
    $region46: #{wavlm_discriminator_forward.2} parent=5 // pred_check_branch
      %388 = sbr.rel (%p386) target = $region48
    $region47: #{wavlm_discriminator_forward.2} parent=5 // pred_region
      %s389 = ssub.s32 %s9, 2
      // Predicated region
      $region49: #{wavlm_discriminator_forward.2} parent=47 // pred_check
        %p390 = pneg %p131
      $region50: #{wavlm_discriminator_forward.2} parent=47 // pred_check_branch
        %392 = sbr.rel (%p390) target = $region52
      $region51: #{wavlm_discriminator_forward.2} parent=47 // pred_region
        %s393 = smul.u32 2, %s23
        %p394 = scmp.lt.s32.totalorder %s22, 1
        %s395 = scalar_select %p394, %s22, 1
        %p396 = scmp.lt.s32.totalorder %s393, 1
        %s397 = scalar_select %p396, %s393, 1
        %s398 = smul.addr %s395, 2
        %s399 = sadd.s32 %s397, %s398
        %s400 = smul.addr %s399, 4
        %s401 = scalar_lea.vmem %s3, %s400
      $region52: #{wavlm_discriminator_forward.2} parent=47 // pred_fallthru
        _
    $region48: #{wavlm_discriminator_forward.2} parent=5 // pred_fallthru
      _
  $region6: #{wavlm_discriminator_forward.2} parent=0 // loop_footer
    %s13 = sadd.s32 1, %s9
  $region7: #{wavlm_discriminator_forward.2} parent=0 // loop_footer_branch
    %8 = sbr.rel target = $region3
  $region8: #{wavlm_discriminator_forward.2} parent=0 // loop_exit
    _

// kernel: wavlm_discriminator_forward.3
$region0: #{wavlm_discriminator_forward.3}
  #allocation0 [shape = 'u32[]', space=smem, size = 0x4, offset = 0x4, fixed_abs, tag = 'smem constant byte address 0x4 - core index']
  #allocation1 [shape = 'u32[144,128]{1,0:T(1,128)}', space=vmem, size = 0x12000, scoped, tag = 'internal scratch']
  #allocation2 [shape = 'f32[1,1]{1,0:T(1,128)S(1)}', space=vmem, size = 0x200, scoped, tag = 'scoped memory for wavlm_discriminator_forward.3']
  %s0 = inlined_call_operand.vmem [shape: bf16[2,32,16], index: 0, kind: input, shape index: {}, may-alias: {0,1}]
  %s1 = inlined_call_operand.vmem [shape: bf16[2,32,16], index: 1, kind: input, shape index: {}, may-alias: {0,1}]
  %s2 = inlined_call_operand.vmem [shape: bf16[80,32], index: 2, kind: input, shape index: {}]
  %s3 = inlined_call_operand.vmem [shape: f32[1,32], index: 3, kind: input, shape index: {}]
  %s4 = inlined_call_operand.vmem [shape: bf16[160,64], index: 4, kind: input, shape index: {}]
  %s5 = inlined_call_operand.vmem [shape: f32[1,64], index: 5, kind: input, shape index: {}]
  %s6 = inlined_call_operand.vmem [shape: bf16[320,64], index: 6, kind: input, shape index: {}]
  %s7 = inlined_call_operand.vmem [shape: f32[1,64], index: 7, kind: input, shape index: {}]
  %s8 = inlined_call_operand.vmem [shape: bf16[3,64,1], index: 8, kind: input, shape index: {}]
  %s9 = inlined_call_operand.<no memory space> [shape: f32[1,1], index: 9, kind: input, shape index: {}]
  %s10 = inlined_call_operand.vmem [shape: f32[2,16,1], index: 10, kind: output, shape index: {}]
  %s11 = sld [smem:[#allocation0]]
  $region73: #{wavlm_discriminator_forward.3} parent=0
    _
  %s13 = ssub.s32 1, %s11
  %s14 = scalar_select 0, %s13, %s11
  %v15 = vstv %s9
  %16 = vst [vmem:[#allocation2] sm:$0x1] %v15
  loop: start=0, step=1, limit=4
  $region2: #{wavlm_discriminator_forward.3} parent=0 // loop_pre_header
    _
  $region3: #{wavlm_discriminator_forward.3} parent=0 // loop_header
    %s18 = sphi 0, %s22
    %p19 = scmp.ge.s32.totalorder %s18, 4
    %s25 = sphi 0, %s37
    %s26 = sphi 0, %s33
    %s27 = sphi 0, %s25
    %s28 = sphi 0, %s26
    %s29 = sphi 0, %s27
    %s30 = sphi 0, %s28
    %s42 = sphi 0, %s44
    %s45 = sphi 0, %s42
    %s46 = sphi 0, %s45
    %s62 = sphi 0, %s46
    %s72 = sphi 0, %s74
    %s75 = sphi 0, %s72
    %s76 = sphi 0, %s75
    %s92 = sphi 0, %s76
    %s96 = sphi 0, %s96
    %s98 = sphi 0, %s96
    %s99 = sphi 0, %s98
    %s113 = sphi 0, %s99
    %s117 = sphi 0, %s117
    %s119 = sphi 0, %s117
    %s120 = sphi 0, %s119
    %s134 = sphi 0, %s120
    %s138 = sphi 0, %s138
    %s140 = sphi 0, %s138
    %s141 = sphi 0, %s140
    %s155 = sphi 0, %s141
    %s159 = sphi 0, %s159
    %s161 = sphi 0, %s159
    %s162 = sphi 0, %s161
    %s176 = sphi 0, %s162
    %s180 = sphi 0, %s180
    %s182 = sphi 0, %s180
    %s183 = sphi 0, %s182
    %s197 = sphi 0, %s183
    %s201 = sphi 0, %s201
    %s203 = sphi 0, %s201
    %s204 = sphi 0, %s203
    %s218 = sphi 0, %s204
    %s222 = sphi 0, %s222
    %s224 = sphi 0, %s222
    %s225 = sphi 0, %s224
    %s239 = sphi 0, %s225
    %s243 = sphi 0, %s243
    %s245 = sphi 0, %s243
    %s246 = sphi 0, %s245
    %s260 = sphi 0, %s246
    %s268 = sphi 0, %s270
    %s271 = sphi 0, %s268
    %s272 = sphi 0, %s271
    %s288 = sphi 0, %s272
  $region4: #{wavlm_discriminator_forward.3} parent=0 // loop_header_branch
    %21 = sbr.rel (%p19) target = $region8
  $region5: #{wavlm_discriminator_forward.3} parent=0 // loop_body
    %s23 = ssub.s32 %s18, 1
    %s24 = ssub.s32 %s18, 2
    %s31 = sadd.s32 1, %s26
    %p32 = scmp.ge.s32.totalorder %s31, 1
    %s33 = scalar_select %p32, 0, %s31
    %s34 = sadd.s32 1, %s25
    %s35 = scalar_select %p32, %s34, %s25
    %p36 = scmp.ge.s32.totalorder %s35, 2
    %s37 = scalar_select %p36, 0, %s35
    %s38 = ssub.s32 %s25, %s37
    %s39 = ssub.s32 %s26, %s33
    %s40 = sor.u32 %s38, %s39
    %p41 = scmp.eq.s32.totalorder %s40, 0
    %s43 = sadd.s32 %s42, 1
    %s44 = scalar_select %p41, %s42, %s43
    %p47 = pneg %p41
    %p48 = scmp.eq.s32.totalorder %s18, 1
    %p49 = por %p47, %p48
    %p50 = scmp.ne.s32.totalorder %s42, %s45
    %p51 = scmp.eq.s32.totalorder %s18, 0
    %p52 = por %p50, %p51
    %p53 = scmp.ne.s32.totalorder %s42, %s45
    %p54 = scmp.eq.s32.totalorder %s23, 1
    %p55 = por %p53, %p54
    %p56 = scmp.ne.s32.totalorder %s45, %s46
    %p57 = scmp.eq.s32.totalorder %s23, 0
    %p58 = por %p56, %p57
    %p59 = scmp.ne.s32.totalorder %s45, %s46
    %p60 = scmp.eq.s32.totalorder %s24, 1
    %p61 = por %p59, %p60
    %p63 = scmp.ne.s32.totalorder %s46, %s62
    %p64 = scmp.eq.s32.totalorder %s24, 0
    %p65 = por %p63, %p64
    %s66 = sadd.s32 %s26, 1
    %s67 = sadd.s32 %s33, 1
    %s68 = ssub.s32 %s25, %s37
    %s69 = ssub.s32 %s66, %s67
    %s70 = sor.u32 %s68, %s69
    %p71 = scmp.eq.s32.totalorder %s70, 0
    %s73 = sadd.s32 %s72, 1
    %s74 = scalar_select %p71, %s72, %s73
    %p77 = pneg %p71
    %p78 = scmp.eq.s32.totalorder %s18, 1
    %p79 = por %p77, %p78
    %p80 = scmp.ne.s32.totalorder %s72, %s75
    %p81 = scmp.eq.s32.totalorder %s18, 0
    %p82 = por %p80, %p81
    %p83 = scmp.ne.s32.totalorder %s72, %s75
    %p84 = scmp.eq.s32.totalorder %s23, 1
    %p85 = por %p83, %p84
    %p86 = scmp.ne.s32.totalorder %s75, %s76
    %p87 = scmp.eq.s32.totalorder %s23, 0
    %p88 = por %p86, %p87
    %p89 = scmp.ne.s32.totalorder %s75, %s76
    %p90 = scmp.eq.s32.totalorder %s24, 1
    %p91 = por %p89, %p90
    %p93 = scmp.ne.s32.totalorder %s76, %s92
    %p94 = scmp.eq.s32.totalorder %s24, 0
    %p95 = por %p93, %p94
    %s97 = sadd.s32 %s96, 1
    %p100 = scmp.eq.s32.totalorder %s18, 1
    %p101 = scmp.ne.s32.totalorder %s96, %s98
    %p102 = scmp.eq.s32.totalorder %s18, 0
    %p103 = por %p101, %p102
    %p104 = scmp.ne.s32.totalorder %s96, %s98
    %p105 = scmp.eq.s32.totalorder %s23, 1
    %p106 = por %p104, %p105
    %p107 = scmp.ne.s32.totalorder %s98, %s99
    %p108 = scmp.eq.s32.totalorder %s23, 0
    %p109 = por %p107, %p108
    %p110 = scmp.ne.s32.totalorder %s98, %s99
    %p111 = scmp.eq.s32.totalorder %s24, 1
    %p112 = por %p110, %p111
    %p114 = scmp.ne.s32.totalorder %s99, %s113
    %p115 = scmp.eq.s32.totalorder %s24, 0
    %p116 = por %p114, %p115
    %s118 = sadd.s32 %s117, 1
    %p121 = scmp.eq.s32.totalorder %s18, 1
    %p122 = scmp.ne.s32.totalorder %s117, %s119
    %p123 = scmp.eq.s32.totalorder %s18, 0
    %p124 = por %p122, %p123
    %p125 = scmp.ne.s32.totalorder %s117, %s119
    %p126 = scmp.eq.s32.totalorder %s23, 1
    %p127 = por %p125, %p126
    %p128 = scmp.ne.s32.totalorder %s119, %s120
    %p129 = scmp.eq.s32.totalorder %s23, 0
    %p130 = por %p128, %p129
    %p131 = scmp.ne.s32.totalorder %s119, %s120
    %p132 = scmp.eq.s32.totalorder %s24, 1
    %p133 = por %p131, %p132
    %p135 = scmp.ne.s32.totalorder %s120, %s134
    %p136 = scmp.eq.s32.totalorder %s24, 0
    %p137 = por %p135, %p136
    %s139 = sadd.s32 %s138, 1
    %p142 = scmp.eq.s32.totalorder %s18, 1
    %p143 = scmp.ne.s32.totalorder %s138, %s140
    %p144 = scmp.eq.s32.totalorder %s18, 0
    %p145 = por %p143, %p144
    %p146 = scmp.ne.s32.totalorder %s138, %s140
    %p147 = scmp.eq.s32.totalorder %s23, 1
    %p148 = por %p146, %p147
    %p149 = scmp.ne.s32.totalorder %s140, %s141
    %p150 = scmp.eq.s32.totalorder %s23, 0
    %p151 = por %p149, %p150
    %p152 = scmp.ne.s32.totalorder %s140, %s141
    %p153 = scmp.eq.s32.totalorder %s24, 1
    %p154 = por %p152, %p153
    %p156 = scmp.ne.s32.totalorder %s141, %s155
    %p157 = scmp.eq.s32.totalorder %s24, 0
    %p158 = por %p156, %p157
    %s160 = sadd.s32 %s159, 1
    %p163 = scmp.eq.s32.totalorder %s18, 1
    %p164 = scmp.ne.s32.totalorder %s159, %s161
    %p165 = scmp.eq.s32.totalorder %s18, 0
    %p166 = por %p164, %p165
    %p167 = scmp.ne.s32.totalorder %s159, %s161
    %p168 = scmp.eq.s32.totalorder %s23, 1
    %p169 = por %p167, %p168
    %p170 = scmp.ne.s32.totalorder %s161, %s162
    %p171 = scmp.eq.s32.totalorder %s23, 0
    %p172 = por %p170, %p171
    %p173 = scmp.ne.s32.totalorder %s161, %s162
    %p174 = scmp.eq.s32.totalorder %s24, 1
    %p175 = por %p173, %p174
    %p177 = scmp.ne.s32.totalorder %s162, %s176
    %p178 = scmp.eq.s32.totalorder %s24, 0
    %p179 = por %p177, %p178
    %s181 = sadd.s32 %s180, 1
    %p184 = scmp.eq.s32.totalorder %s18, 1
    %p185 = scmp.ne.s32.totalorder %s180, %s182
    %p186 = scmp.eq.s32.totalorder %s18, 0
    %p187 = por %p185, %p186
    %p188 = scmp.ne.s32.totalorder %s180, %s182
    %p189 = scmp.eq.s32.totalorder %s23, 1
    %p190 = por %p188, %p189
    %p191 = scmp.ne.s32.totalorder %s182, %s183
    %p192 = scmp.eq.s32.totalorder %s23, 0
    %p193 = por %p191, %p192
    %p194 = scmp.ne.s32.totalorder %s182, %s183
    %p195 = scmp.eq.s32.totalorder %s24, 1
    %p196 = por %p194, %p195
    %p198 = scmp.ne.s32.totalorder %s183, %s197
    %p199 = scmp.eq.s32.totalorder %s24, 0
    %p200 = por %p198, %p199
    %s202 = sadd.s32 %s201, 1
    %p205 = scmp.eq.s32.totalorder %s18, 1
    %p206 = scmp.ne.s32.totalorder %s201, %s203
    %p207 = scmp.eq.s32.totalorder %s18, 0
    %p208 = por %p206, %p207
    %p209 = scmp.ne.s32.totalorder %s201, %s203
    %p210 = scmp.eq.s32.totalorder %s23, 1
    %p211 = por %p209, %p210
    %p212 = scmp.ne.s32.totalorder %s203, %s204
    %p213 = scmp.eq.s32.totalorder %s23, 0
    %p214 = por %p212, %p213
    %p215 = scmp.ne.s32.totalorder %s203, %s204
    %p216 = scmp.eq.s32.totalorder %s24, 1
    %p217 = por %p215, %p216
    %p219 = scmp.ne.s32.totalorder %s204, %s218
    %p220 = scmp.eq.s32.totalorder %s24, 0
    %p221 = por %p219, %p220
    %s223 = sadd.s32 %s222, 1
    %p226 = scmp.eq.s32.totalorder %s18, 1
    %p227 = scmp.ne.s32.totalorder %s222, %s224
    %p228 = scmp.eq.s32.totalorder %s18, 0
    %p229 = por %p227, %p228
    %p230 = scmp.ne.s32.totalorder %s222, %s224
    %p231 = scmp.eq.s32.totalorder %s23, 1
    %p232 = por %p230, %p231
    %p233 = scmp.ne.s32.totalorder %s224, %s225
    %p234 = scmp.eq.s32.totalorder %s23, 0
    %p235 = por %p233, %p234
    %p236 = scmp.ne.s32.totalorder %s224, %s225
    %p237 = scmp.eq.s32.totalorder %s24, 1
    %p238 = por %p236, %p237
    %p240 = scmp.ne.s32.totalorder %s225, %s239
    %p241 = scmp.eq.s32.totalorder %s24, 0
    %p242 = por %p240, %p241
    %s244 = sadd.s32 %s243, 1
    %p247 = scmp.eq.s32.totalorder %s18, 1
    %p248 = scmp.ne.s32.totalorder %s243, %s245
    %p249 = scmp.eq.s32.totalorder %s18, 0
    %p250 = por %p248, %p249
    %p251 = scmp.ne.s32.totalorder %s243, %s245
    %p252 = scmp.eq.s32.totalorder %s23, 1
    %p253 = por %p251, %p252
    %p254 = scmp.ne.s32.totalorder %s245, %s246
    %p255 = scmp.eq.s32.totalorder %s23, 0
    %p256 = por %p254, %p255
    %p257 = scmp.ne.s32.totalorder %s245, %s246
    %p258 = scmp.eq.s32.totalorder %s24, 1
    %p259 = por %p257, %p258
    %p261 = scmp.ne.s32.totalorder %s246, %s260
    %p262 = scmp.eq.s32.totalorder %s24, 0
    %p263 = por %p261, %p262
    %s264 = ssub.s32 %s25, %s37
    %s265 = ssub.s32 %s26, %s33
    %s266 = sor.u32 %s264, %s265
    %p267 = scmp.eq.s32.totalorder %s266, 0
    %s269 = sadd.s32 %s268, 1
    %s270 = scalar_select %p267, %s268, %s269
    %p273 = pneg %p267
    %p274 = scmp.eq.s32.totalorder %s18, 1
    %p275 = por %p273, %p274
    %p276 = scmp.ne.s32.totalorder %s268, %s271
    %p277 = scmp.eq.s32.totalorder %s18, 0
    %p278 = por %p276, %p277
    %p279 = scmp.ne.s32.totalorder %s268, %s271
    %p280 = scmp.eq.s32.totalorder %s23, 1
    %p281 = por %p279, %p280
    %p282 = scmp.ne.s32.totalorder %s271, %s272
    %p283 = scmp.eq.s32.totalorder %s23, 0
    %p284 = por %p282, %p283
    %p285 = scmp.ne.s32.totalorder %s271, %s272
    %p286 = scmp.eq.s32.totalorder %s24, 1
    %p287 = por %p285, %p286
    %p289 = scmp.ne.s32.totalorder %s272, %s288
    %p290 = scmp.eq.s32.totalorder %s24, 0
    %p291 = por %p289, %p290
    %p292 = scmp.le.s32.totalorder 1, %s18
    %p293 = scmp.lt.s32.totalorder %s18, 3
    %p294 = pnand %p292, %p293
    %p295 = pneg %p294
    // Predicated region
    $region9: #{wavlm_discriminator_forward.3} parent=5 // pred_check
      _
    $region10: #{wavlm_discriminator_forward.3} parent=5 // pred_check_branch
      %297 = sbr.rel (%p294) target = $region12
    $region11: #{wavlm_discriminator_forward.3} parent=5 // pred_region
      %s298 = ssub.s32 %s18, 1
      // Predicated region
      $region13: #{wavlm_discriminator_forward.3} parent=11 // pred_check
        %p299 = pneg %p109
      $region14: #{wavlm_discriminator_forward.3} parent=11 // pred_check_branch
        %301 = sbr.rel (%p299) target = $region16
      $region15: #{wavlm_discriminator_forward.3} parent=11 // pred_region
        _
      $region16: #{wavlm_discriminator_forward.3} parent=11 // pred_fallthru
        _
      // Predicated region
      $region17: #{wavlm_discriminator_forward.3} parent=11 // pred_check
        %p302 = pneg %p130
      $region18: #{wavlm_discriminator_forward.3} parent=11 // pred_check_branch
        %304 = sbr.rel (%p302) target = $region20
      $region19: #{wavlm_discriminator_forward.3} parent=11 // pred_region
        _
      $region20: #{wavlm_discriminator_forward.3} parent=11 // pred_fallthru
        _
      // Predicated region
      $region21: #{wavlm_discriminator_forward.3} parent=11 // pred_check
        %p305 = pneg %p151
      $region22: #{wavlm_discriminator_forward.3} parent=11 // pred_check_branch
        %307 = sbr.rel (%p305) target = $region24
      $region23: #{wavlm_discriminator_forward.3} parent=11 // pred_region
        _
      $region24: #{wavlm_discriminator_forward.3} parent=11 // pred_fallthru
        _
      // Predicated region
      $region25: #{wavlm_discriminator_forward.3} parent=11 // pred_check
        %p308 = pneg %p172
      $region26: #{wavlm_discriminator_forward.3} parent=11 // pred_check_branch
        %310 = sbr.rel (%p308) target = $region28
      $region27: #{wavlm_discriminator_forward.3} parent=11 // pred_region
        _
      $region28: #{wavlm_discriminator_forward.3} parent=11 // pred_fallthru
        _
      // Predicated region
      $region29: #{wavlm_discriminator_forward.3} parent=11 // pred_check
        %p311 = pneg %p193
      $region30: #{wavlm_discriminator_forward.3} parent=11 // pred_check_branch
        %313 = sbr.rel (%p311) target = $region32
      $region31: #{wavlm_discriminator_forward.3} parent=11 // pred_region
        _
      $region32: #{wavlm_discriminator_forward.3} parent=11 // pred_fallthru
        _
      // Predicated region
      $region33: #{wavlm_discriminator_forward.3} parent=11 // pred_check
        %p314 = pneg %p214
      $region34: #{wavlm_discriminator_forward.3} parent=11 // pred_check_branch
        %316 = sbr.rel (%p314) target = $region36
      $region35: #{wavlm_discriminator_forward.3} parent=11 // pred_region
        _
      $region36: #{wavlm_discriminator_forward.3} parent=11 // pred_fallthru
        _
      // Predicated region
      $region37: #{wavlm_discriminator_forward.3} parent=11 // pred_check
        %p317 = pneg %p235
      $region38: #{wavlm_discriminator_forward.3} parent=11 // pred_check_branch
        %319 = sbr.rel (%p317) target = $region40
      $region39: #{wavlm_discriminator_forward.3} parent=11 // pred_region
        _
      $region40: #{wavlm_discriminator_forward.3} parent=11 // pred_fallthru
        _
      // Predicated region
      $region41: #{wavlm_discriminator_forward.3} parent=11 // pred_check
        %p320 = pneg %p256
      $region42: #{wavlm_discriminator_forward.3} parent=11 // pred_check_branch
        %322 = sbr.rel (%p320) target = $region44
      $region43: #{wavlm_discriminator_forward.3} parent=11 // pred_region
        _
      $region44: #{wavlm_discriminator_forward.3} parent=11 // pred_fallthru
        _
    $region12: #{wavlm_discriminator_forward.3} parent=5 // pred_fallthru
      _
    %p323 = scmp.lt.s32.totalorder %s18, 2
    // Predicated region
    $region45: #{wavlm_discriminator_forward.3} parent=5 // pred_check
      %p324 = pneg %p323
    $region46: #{wavlm_discriminator_forward.3} parent=5 // pred_check_branch
      %326 = sbr.rel (%p324) target = $region48
    $region47: #{wavlm_discriminator_forward.3} parent=5 // pred_region
      // Predicated region
      $region49: #{wavlm_discriminator_forward.3} parent=47 // pred_check
        %p327 = pneg %p52
      $region50: #{wavlm_discriminator_forward.3} parent=47 // pred_check_branch
        %329 = sbr.rel (%p327) target = $region52
      $region51: #{wavlm_discriminator_forward.3} parent=47 // pred_region
        %s330 = smul.u32 2, %s26
        %p331 = scmp.lt.s32.totalorder %s25, 1
        %s332 = scalar_select %p331, %s25, 1
        %p333 = scmp.lt.s32.totalorder %s330, 3
        %s334 = scalar_select %p333, %s330, 3
        %s335 = smul.addr %s332, 4
        %s336 = sadd.s32 %s334, %s335
        %s337 = smul.addr %s336, 4
        %s338 = scalar_lea.vmem %s0, %s337
        %s339 = smul.u32 2, %s26
      $region52: #{wavlm_discriminator_forward.3} parent=47 // pred_fallthru
        _
      // Predicated region
      $region53: #{wavlm_discriminator_forward.3} parent=47 // pred_check
        %p340 = pneg %p82
      $region54: #{wavlm_discriminator_forward.3} parent=47 // pred_check_branch
        %342 = sbr.rel (%p340) target = $region56
      $region55: #{wavlm_discriminator_forward.3} parent=47 // pred_region
        %s343 = sadd.s32 %s26, 1
        %s344 = smul.u32 2, %s343
        %p345 = scmp.lt.s32.totalorder %s25, 1
        %s346 = scalar_select %p345, %s25, 1
        %p347 = scmp.lt.s32.totalorder %s344, 3
        %s348 = scalar_select %p347, %s344, 3
        %s349 = smul.addr %s346, 4
        %s350 = sadd.s32 %s348, %s349
        %s351 = smul.addr %s350, 4
        %s352 = scalar_lea.vmem %s1, %s351
        %s353 = sadd.s32 %s26, 1
        %s354 = smul.u32 2, %s353
      $region56: #{wavlm_discriminator_forward.3} parent=47 // pred_fallthru
        _
    $region48: #{wavlm_discriminator_forward.3} parent=5 // pred_fallthru
      _
    %p355 = scmp.le.s32.totalorder 1, %s18
    %p356 = scmp.lt.s32.totalorder %s18, 3
    %p357 = pnand %p355, %p356
    %p358 = pneg %p357
    // Predicated region
    $region57: #{wavlm_discriminator_forward.3} parent=5 // pred_check
      _
    $region58: #{wavlm_discriminator_forward.3} parent=5 // pred_check_branch
      %360 = sbr.rel (%p357) target = $region60
    $region59: #{wavlm_discriminator_forward.3} parent=5 // pred_region
      %s361 = ssub.s32 %s18, 1
      %s362 = smul.u32 2, %s28
      %p363 = scmp.lt.s32.totalorder %s27, 1
      %s364 = scalar_select %p363, %s27, 1
      %p365 = scmp.lt.s32.totalorder %s362, 3
      %s366 = scalar_select %p365, %s362, 3
      %s367 = smul.addr %s364, 4
      %s368 = sadd.s32 %s366, %s367
      %s369 = smul.addr %s368, 4
      %s370 = scalar_lea.vmem %s0, %s369
      %p371 = pneg %p58
      %p372 = pneg %p55
      %s373 = sadd.s32 %s28, 1
      %s374 = smul.u32 2, %s373
      %p375 = scmp.lt.s32.totalorder %s27, 1
      %s376 = scalar_select %p375, %s27, 1
      %p377 = scmp.lt.s32.totalorder %s374, 3
      %s378 = scalar_select %p377, %s374, 3
      %s379 = smul.addr %s376, 4
      %s380 = sadd.s32 %s378, %s379
      %s381 = smul.addr %s380, 4
      %s382 = scalar_lea.vmem %s1, %s381
      %p383 = pneg %p88
      %p384 = pneg %p85
      %p385 = pneg %p109
      %p386 = pneg %p106
      %p387 = pneg %p130
      %p388 = pneg %p127
      %p389 = pneg %p151
      %p390 = pneg %p148
      %p391 = pneg %p172
      %p392 = pneg %p169
      %p393 = pneg %p193
      %p394 = pneg %p190
      %p395 = pneg %p214
      %p396 = pneg %p211
      %p397 = pneg %p235
      %p398 = pneg %p232
      %p399 = pneg %p256
      %p400 = pneg %p253
      %p401 = pneg %p284
      %p402 = pneg %p281
      %s403 = smul.u32 2, %s28
      %p404 = scmp.lt.s32.totalorder %s27, 1
      %s405 = scalar_select %p404, %s27, 1
      %p406 = scmp.lt.s32.totalorder %s403, 1
      %s407 = scalar_select %p406, %s403, 1
      %s408 = smul.addr %s405, 2
      %s409 = sadd.s32 %s407, %s408
      %s410 = smul.addr %s409, 8
      %s411 = scalar_lea.vmem %s10, %s410
      %s412 = smul.u32 2, %s28
      %p413 = scmp.lt.s32.totalorder %s27, 1
      %s414 = scalar_select %p413, %s27, 1
      %p415 = scmp.lt.s32.totalorder %s412, 3
      %s416 = scalar_select %p415, %s412, 3
      %s417 = smul.addr %s414, 4
      %s418 = sadd.s32 %s416, %s417
      %s419 = smul.addr %s418, 4
      %s420 = scalar_lea.vmem %s0, %s419
      %s421 = smul.u32 2, %s28
      %s422 = sadd.s32 %s28, 1
      %s423 = smul.u32 2, %s422
      %p424 = scmp.lt.s32.totalorder %s27, 1
      %s425 = scalar_select %p424, %s27, 1
      %p426 = scmp.lt.s32.totalorder %s423, 3
      %s427 = scalar_select %p426, %s423, 3
      %s428 = smul.addr %s425, 4
      %s429 = sadd.s32 %s427, %s428
      %s430 = smul.addr %s429, 4
      %s431 = scalar_lea.vmem %s1, %s430
      %s432 = sadd.s32 %s28, 1
      %s433 = smul.u32 2, %s432
      %s434 = smul.u32 2, %s28
      %p435 = scmp.lt.s32.totalorder %s27, 1
      %s436 = scalar_select %p435, %s27, 1
      %p437 = scmp.lt.s32.totalorder %s434, 1
      %s438 = scalar_select %p437, %s434, 1
      %s439 = smul.addr %s436, 2
      %s440 = sadd.s32 %s438, %s439
      %s441 = smul.addr %s440, 8
      %s442 = scalar_lea.vmem %s10, %s441
      %s443 = smul.u32 2, %s28
      %s445 = smul.u32 %s28, 16
      %v446 = vld [vmem:[%s420] sm:$0xf]
      %v447 = vld [vmem:[%s420 + $0x4] sm:$0xf]
      %v448 = vld [vmem:[%s431] sm:$0xf]
      %v449 = vld [vmem:[%s431 + $0x4] sm:$0xf]
      %v452 = vunpack.c.l.b16 %v446
      %v453 = vunpack.c.l.b16 %v447
      %v454 = vpack.c.b16 %v453, %v452
      %v457 = vunpack.c.l.b16 %v448
      %v458 = vunpack.c.l.b16 %v449
      %v459 = vpack.c.b16 %v458, %v457
      %vm460 = vsmask.f32 7424
      %v462 = vshrl.u32 %v454, 16
      %v464 = vshll.u32 %v454, 16
      %v466 = vrot.slane %v464, 1
      %v467 = vor.u32 %v462, %v466
      %v469 = vshll.u32 %v459, 16
      %v471 = vrot.slane %v469, 1
      %v472 = vsel %vm460, %v467, %v471
      %v473 = vshrl.u32 %v459, 16
      %v475 = vor.u32 %v473, %v471
      %476 = vrot.lane.b32.xlu0 %v472, 16
      %v477 = vpop.permute.xlu0 %476
      %478 = vrot.lane.b32.xlu0 %v475, 16
      %v479 = vpop.permute.xlu0 %478
      %vm480 = vcmask 1046528
      %v481 = vrot.slane %v454, 1
      %v482 = vrot.slane %v459, 1
      %v483 = vsel %vm480, %v481, %v482
      %484 = vrot.lane.b32.xlu0 %v483, 32
      %v485 = vpop.permute.xlu0 %484
      %486 = vrot.lane.b32.xlu0 %v482, 32
      %v487 = vpop.permute.xlu0 %486
      %vm488 = vsmask.f32 6400
      %v489 = vrot.slane %v462, 1
      %v490 = vrot.slane %v464, 2
      %v491 = vor.u32 %v489, %v490
      %v492 = vrot.slane %v473, 1
      %v493 = vrot.slane %v469, 2
      %v494 = vor.u32 %v492, %v493
      %v495 = vsel %vm488, %v491, %v494
      %496 = vrot.lane.b32.xlu0 %v495, 48
      %v497 = vpop.permute.xlu0 %496
      %498 = vrot.lane.b32.xlu0 %v494, 48
      %v499 = vpop.permute.xlu0 %498
      %vm500 = vcmask 1045504
      %v501 = vrot.slane %v454, 2
      %v502 = vrot.slane %v459, 2
      %v503 = vsel %vm500, %v501, %v502
      %504 = vrot.lane.b32.xlu0 %v503, 64
      %v505 = vpop.permute.xlu0 %504
      %506 = vrot.lane.b32.xlu0 %v502, 64
      %v507 = vpop.permute.xlu0 %506
      %vm508 = vcmask 130048
      %v510 = vsel %vm508, %v454, %v477
      %v512 = vsel %vm508, %v459, %v479
      %vm513 = vcmask 261120
      %v515 = vsel %vm513, %v510, %v485
      %v517 = vsel %vm513, %v512, %v487
      %vm518 = vcmask 392192
      %v520 = vsel %vm518, %v515, %v497
      %v522 = vsel %vm518, %v517, %v499
      %vm523 = vcmask 523264
      %v525 = vsel %vm523, %v520, %v505
      %v527 = vsel %vm523, %v522, %v507
      %v528 = vld [vmem:[%s2] sm:$0xf]
      %v529 = vld [vmem:[%s2 + $0x4] sm:$0xf]
      %v530 = vld [vmem:[%s2 + $0x8] sm:$0xf]
      %v531 = vld [vmem:[%s2 + $0xc] sm:$0xf]
      %v532 = vld [vmem:[%s2 + $0x10] sm:$0xf]
      %v533 = vld [vmem:[%s2 + $0x14] sm:$0xf]
      %v534 = vld [vmem:[%s2 + $0x18] sm:$0xf]
      %v535 = vld [vmem:[%s2 + $0x1c] sm:$0xf]
      %v536 = vld [vmem:[%s2 + $0x20] sm:$0xf]
      %v537 = vld [vmem:[%s2 + $0x24] sm:$0xf]
      %v538 = vld [vmem:[%s3] sm:$0x1]
      %v540 = vlaneseq
      %v541 = vshrl.u32 %v540, 7
      %v542 = vsub.s32 0, %v541
      %v543 = vrot.slane %v538, %v542
      %v555 = vunpack.c.l.b16 %v528
      %v556 = vunpack.c.l.b16 %v529
      %v557 = vunpack.c.l.b16 %v530
      %v558 = vunpack.c.l.b16 %v531
      %v559 = vunpack.c.l.b16 %v532
      %v560 = vunpack.c.l.b16 %v533
      %v561 = vunpack.c.l.b16 %v534
      %v562 = vunpack.c.l.b16 %v535
      %v563 = vunpack.c.l.b16 %v536
      %v564 = vunpack.c.l.b16 %v537
      %v565 = vpack.c.b16 %v556, %v555
      %v566 = vpack.c.b16 %v558, %v557
      %v567 = vpack.c.b16 %v560, %v559
      %v568 = vpack.c.b16 %v562, %v561
      %v569 = vpack.c.b16 %v564, %v563
      %vm575 = vcmask 654336
      %v576 = vsel %vm575, %v525, 0
      %v578 = vsel %vm575, %v527, 0
      %580 = vmatprep.subr.bf16.mxu0 0
      %581 = vmatpush1.bf16.msra.mxu0 %v565
      %582 = vmatprep.subr.bf16.mxu0 0
      %583 = vmatpush1.bf16.msra.mxu0 %v566
      %584 = vmatprep.subr.bf16.mxu0 0
      %585 = vmatpush1.bf16.msra.mxu0 %v567
      %586 = vmatprep.subr.bf16.mxu0 0
      %587 = vmatpush1.bf16.msra.mxu0 %v568
      %588 = vmatprep.subr.bf16.mxu0 0
      %589 = vmatpush1.bf16.msra.mxu0 %v569
      %590 = vmatprep.subr.bf16.mxu0 0
      %591 = vmatpush1.bf16.msra.mxu0 0
      %592 = vmatprep.subr.bf16.mxu0 0
      %593 = vmatpush1.bf16.msra.mxu0 0
      %594 = vmatprep.subr.bf16.mxu0 0
      %595 = vmatpush1.bf16.msra.mxu0 0
      %596 = vmatprep.subr.bf16.mxu0 0
      %597 = vmatpush1.bf16.msra.mxu0 0
      %598 = vmatprep.subr.bf16.mxu0 0
      %599 = vmatpush1.bf16.msra.mxu0 0
      %600 = vmatprep.subr.bf16.mxu0 0
      %601 = vmatpush1.bf16.msra.mxu0 0
      %602 = vmatprep.subr.bf16.mxu0 0
      %603 = vmatpush1.bf16.msra.mxu0 0
      %604 = vmatprep.subr.bf16.mxu0 0
      %605 = vmatpush1.bf16.msra.mxu0 0
      %606 = vmatprep.subr.bf16.mxu0 0
      %607 = vmatpush1.bf16.msra.mxu0 0
      %608 = vmatprep.subr.bf16.mxu0 0
      %609 = vmatpush1.bf16.msra.mxu0 0
      %610 = vmatprep.subr.bf16.mxu0 0
      %611 = vmatpush1.bf16.msra.mxu0 0
      %612 = vmatprep.mubr.bf16.mxu0 0
      %613 = vmatmul.mubr.bf16.gmra.mrb[0].mxu0 %v576
      %v614 = vpop.f32.mrb[0].mxu0
      %v615 = vadd.f32 %v543, %v614
      %v616 = vpop.f32.mrb[0].mxu0
      %v617 = vpop.f32.mrb[0].mxu0
      %v618 = vadd.f32 %v543, %v617
      %v619 = vpop.f32.mrb[0].mxu0
      %620 = vmatprep.mubr.bf16.mxu0 0
      %621 = vmatmul.mubr.bf16.gmra.mrb[0].mxu0 %v578
      %v622 = vpop.f32.mrb[0].mxu0
      %v623 = vadd.f32 %v543, %v622
      %v624 = vpop.f32.mrb[0].mxu0
      %v625 = vpop.f32.mrb[0].mxu0
      %v626 = vadd.f32 %v543, %v625
      %v627 = vpop.f32.mrb[0].mxu0
      %628 = vdwg.mxu0
      %vm629 = vcmp.ge.f32.partialorder %v615, 0.0
      %vm630 = vcmp.ge.f32.partialorder %v618, 0.0
      %vm631 = vcmp.ge.f32.partialorder %v623, 0.0
      %vm632 = vcmp.ge.f32.partialorder %v626, 0.0
      %v633 = vmul.f32 %v615, 0.1
      %v634 = vmul.f32 %v618, 0.1
      %v635 = vmul.f32 %v623, 0.1
      %v636 = vmul.f32 %v626, 0.1
      %v637 = vsel %vm629, %v615, %v633
      %v638 = vsel %vm630, %v618, %v634
      %v639 = vsel %vm631, %v623, %v635
      %v640 = vsel %vm632, %v626, %v636
      %s641 = sadd.s32 %s445, 4294967291
      %v642 = vlaneseq
      %v643 = vshrl.u32 %v642, 7
      %v644 = vadd.s32 %v643, 8
      %v645 = vadd.s32 %v643, 16
      %v646 = vadd.s32 %v643, 24
      %v647 = vstv %s641
      %v648 = vadd.s32 %v647, %v643
      %v649 = vadd.s32 %v647, %v644
      %v650 = vadd.s32 %v647, %v645
      %v651 = vadd.s32 %v647, %v646
      %vm652 = vcmp.ge.s32.totalorder %v648, 0
      %vm653 = vcmp.ge.s32.totalorder %v649, 0
      %vm654 = vcmp.ge.s32.totalorder %v650, 0
      %vm655 = vcmp.ge.s32.totalorder %v651, 0
      %vm656 = vcmp.lt.s32.totalorder %v648, 16
      %vm657 = vcmp.lt.s32.totalorder %v649, 16
      %vm658 = vcmp.lt.s32.totalorder %v650, 16
      %vm659 = vcmp.lt.s32.totalorder %v651, 16
      %vm660 = vmand %vm652, %vm656
      %vm661 = vmand %vm653, %vm657
      %vm662 = vmand %vm654, %vm658
      %vm663 = vmand %vm655, %vm659
      %v664 = vsel %vm660, 1, 0
      %v665 = vsel %vm661, 1, 0
      %v666 = vsel %vm662, 1, 0
      %v667 = vsel %vm663, 1, 0
      %v668 = vcvt.s32.f32 %v664
      %v669 = vcvt.s32.f32 %v665
      %v670 = vcvt.s32.f32 %v666
      %v671 = vcvt.s32.f32 %v667
      %v672 = vpack.c.bf16 %v669, %v668
      %v673 = vpack.c.bf16 %v671, %v670
      %v674 = vpack.c.bf16 %v638, %v637
      %v675 = vpack.c.bf16 %v640, %v639
      %v676 = vmul.bf16 %v674, %v672
      %v677 = vmul.bf16 %v675, %v673
      %v679 = vshrl.u32 %v676, 16
      %v681 = vshll.u32 %v676, 16
      %v683 = vrot.slane %v681, 1
      %v684 = vor.u32 %v679, %v683
      %v686 = vshll.u32 %v677, 16
      %v688 = vrot.slane %v686, 1
      %v689 = vsel %vm460, %v684, %v688
      %v690 = vshrl.u32 %v677, 16
      %v692 = vor.u32 %v690, %v688
      %693 = vrot.lane.b32.xlu0 %v689, 32
      %v694 = vpop.permute.xlu0 %693
      %695 = vrot.lane.b32.xlu0 %v692, 32
      %v696 = vpop.permute.xlu0 %695
      %v699 = vrot.slane %v676, 1
      %v700 = vrot.slane %v677, 1
      %v701 = vsel %vm480, %v699, %v700
      %702 = vrot.lane.b32.xlu0 %v701, 64
      %v703 = vpop.permute.xlu0 %702
      %704 = vrot.lane.b32.xlu0 %v700, 64
      %v705 = vpop.permute.xlu0 %704
      %v706 = vrot.slane %v679, 1
      %v707 = vrot.slane %v681, 2
      %v708 = vor.u32 %v706, %v707
      %v709 = vrot.slane %v690, 1
      %v710 = vrot.slane %v686, 2
      %v711 = vor.u32 %v709, %v710
      %v712 = vsel %vm488, %v708, %v711
      %713 = vrot.lane.b32.xlu0 %v712, 96
      %v714 = vpop.permute.xlu0 %713
      %715 = vrot.lane.b32.xlu0 %v711, 96
      %v716 = vpop.permute.xlu0 %715
      %v717 = vrot.slane %v676, 2
      %v718 = vrot.slane %v677, 2
      %v719 = vsel %vm500, %v717, %v718
      %v721 = vsel %vm513, %v676, %v694
      %v723 = vsel %vm513, %v677, %v696
      %v725 = vsel %vm523, %v721, %v703
      %v727 = vsel %vm523, %v723, %v705
      %vm728 = vcmask 785408
      %v730 = vsel %vm728, %v725, %v714
      %v733 = vsel %vm728, %v727, %v716
      %v735 = vld [vmem:[%s4] sm:$0xf]
      %v736 = vld [vmem:[%s4 + $0x4] sm:$0xf]
      %v737 = vld [vmem:[%s4 + $0x8] sm:$0xf]
      %v738 = vld [vmem:[%s4 + $0xc] sm:$0xf]
      %v739 = vld [vmem:[%s4 + $0x10] sm:$0xf]
      %v740 = vld [vmem:[%s4 + $0x14] sm:$0xf]
      %v741 = vld [vmem:[%s4 + $0x18] sm:$0xf]
      %v742 = vld [vmem:[%s4 + $0x1c] sm:$0xf]
      %v743 = vld [vmem:[%s4 + $0x20] sm:$0xf]
      %v744 = vld [vmem:[%s4 + $0x24] sm:$0xf]
      %v745 = vld [vmem:[%s4 + $0x28] sm:$0xf]
      %v746 = vld [vmem:[%s4 + $0x2c] sm:$0xf]
      %v747 = vld [vmem:[%s4 + $0x30] sm:$0xf]
      %v748 = vld [vmem:[%s4 + $0x34] sm:$0xf]
      %v749 = vld [vmem:[%s4 + $0x38] sm:$0xf]
      %v750 = vld [vmem:[%s4 + $0x3c] sm:$0xf]
      %v751 = vld [vmem:[%s4 + $0x40] sm:$0xf]
      %v752 = vld [vmem:[%s4 + $0x44] sm:$0xf]
      %v753 = vld [vmem:[%s4 + $0x48] sm:$0xf]
      %v754 = vld [vmem:[%s4 + $0x4c] sm:$0xf]
      %v755 = vld [vmem:[%s5] sm:$0x1]
      %v757 = vlaneseq
      %v758 = vshrl.u32 %v757, 7
      %v759 = vsub.s32 0, %v758
      %v760 = vrot.slane %v755, %v759
      %v782 = vunpack.c.l.b16 %v735
      %v783 = vunpack.c.l.b16 %v736
      %v784 = vunpack.c.l.b16 %v737
      %v785 = vunpack.c.l.b16 %v738
      %v786 = vunpack.c.l.b16 %v739
      %v787 = vunpack.c.l.b16 %v740
      %v788 = vunpack.c.l.b16 %v741
      %v789 = vunpack.c.l.b16 %v742
      %v790 = vunpack.c.l.b16 %v743
      %v791 = vunpack.c.l.b16 %v744
      %v792 = vunpack.c.l.b16 %v745
      %v793 = vunpack.c.l.b16 %v746
      %v794 = vunpack.c.l.b16 %v747
      %v795 = vunpack.c.l.b16 %v748
      %v796 = vunpack.c.l.b16 %v749
      %v797 = vunpack.c.l.b16 %v750
      %v798 = vunpack.c.l.b16 %v751
      %v799 = vunpack.c.l.b16 %v752
      %v800 = vunpack.c.l.b16 %v753
      %v801 = vunpack.c.l.b16 %v754
      %v802 = vpack.c.b16 %v783, %v782
      %v803 = vpack.c.b16 %v785, %v784
      %v804 = vpack.c.b16 %v787, %v786
      %v805 = vpack.c.b16 %v789, %v788
      %v806 = vpack.c.b16 %v791, %v790
      %v807 = vpack.c.b16 %v793, %v792
      %v808 = vpack.c.b16 %v795, %v794
      %v809 = vpack.c.b16 %v797, %v796
      %v810 = vpack.c.b16 %v799, %v798
      %v811 = vpack.c.b16 %v801, %v800
      %v823 = vsel %vm513, %v719, 0
      %v826 = vsel %vm513, %v718, 0
      %828 = vmatprep.subr.bf16.mxu0 0
      %829 = vmatpush1.bf16.msra.mxu0 %v802
      %830 = vmatprep.subr.bf16.mxu0 0
      %831 = vmatpush1.bf16.msra.mxu0 %v803
      %832 = vmatprep.subr.bf16.mxu0 0
      %833 = vmatpush1.bf16.msra.mxu0 %v804
      %834 = vmatprep.subr.bf16.mxu0 0
      %835 = vmatpush1.bf16.msra.mxu0 %v805
      %836 = vmatprep.subr.bf16.mxu0 0
      %837 = vmatpush1.bf16.msra.mxu0 %v806
      %838 = vmatprep.subr.bf16.mxu0 0
      %839 = vmatpush1.bf16.msra.mxu0 %v807
      %840 = vmatprep.subr.bf16.mxu0 0
      %841 = vmatpush1.bf16.msra.mxu0 %v808
      %842 = vmatprep.subr.bf16.mxu0 0
      %843 = vmatpush1.bf16.msra.mxu0 %v809
      %844 = vmatprep.subr.bf16.mxu0 0
      %845 = vmatpush1.bf16.msra.mxu0 %v810
      %846 = vmatprep.subr.bf16.mxu0 0
      %847 = vmatpush1.bf16.msra.mxu0 %v811
      %848 = vmatprep.subr.bf16.mxu0 0
      %849 = vmatpush1.bf16.msra.mxu0 0
      %850 = vmatprep.subr.bf16.mxu0 0
      %851 = vmatpush1.bf16.msra.mxu0 0
      %852 = vmatprep.subr.bf16.mxu0 0
      %853 = vmatpush1.bf16.msra.mxu0 0
      %854 = vmatprep.subr.bf16.mxu0 0
      %855 = vmatpush1.bf16.msra.mxu0 0
      %856 = vmatprep.subr.bf16.mxu0 0
      %857 = vmatpush1.bf16.msra.mxu0 0
      %858 = vmatprep.subr.bf16.mxu0 0
      %859 = vmatpush1.bf16.msra.mxu0 0
      %860 = vmatprep.mubr.bf16.mxu0 %v823
      %861 = vmatmul.mubr.bf16.gmra.mrb[0].mxu0 %v730
      %v862 = vpop.f32.mrb[0].mxu0
      %v863 = vadd.f32 %v760, %v862
      %v864 = vpop.f32.mrb[0].mxu0
      %v865 = vpop.f32.mrb[0].mxu0
      %v866 = vadd.f32 %v760, %v865
      %v867 = vpop.f32.mrb[0].mxu0
      %868 = vmatprep.mubr.bf16.mxu0 %v826
      %869 = vmatmul.mubr.bf16.gmra.mrb[0].mxu0 %v733
      %v870 = vpop.f32.mrb[0].mxu0
      %v871 = vadd.f32 %v760, %v870
      %v872 = vpop.f32.mrb[0].mxu0
      %v873 = vpop.f32.mrb[0].mxu0
      %v874 = vpop.f32.mrb[0].mxu0
      %875 = vdwg.mxu0
      %vm876 = vcmp.ge.f32.partialorder %v863, 0.0
      %vm877 = vcmp.ge.f32.partialorder %v866, 0.0
      %vm878 = vcmp.ge.f32.partialorder %v871, 0.0
      %v879 = vmul.f32 %v863, 0.1
      %v880 = vmul.f32 %v866, 0.1
      %v881 = vmul.f32 %v871, 0.1
      %v882 = vsel %vm876, %v863, %v879
      %v883 = vsel %vm877, %v866, %v880
      %v884 = vsel %vm878, %v871, %v881
      %s885 = sadd.s32 %s445, 4294967293
      %v886 = vstv %s885
      %v887 = vadd.s32 %v886, %v643
      %v888 = vadd.s32 %v886, %v644
      %v889 = vadd.s32 %v886, %v645
      %vm890 = vcmp.ge.s32.totalorder %v887, 0
      %vm891 = vcmp.ge.s32.totalorder %v888, 0
      %vm892 = vcmp.ge.s32.totalorder %v889, 0
      %vm893 = vcmp.lt.s32.totalorder %v887, 16
      %vm894 = vcmp.lt.s32.totalorder %v888, 16
      %vm895 = vcmp.lt.s32.totalorder %v889, 16
      %vm896 = vmand %vm890, %vm893
      %vm897 = vmand %vm891, %vm894
      %vm898 = vmand %vm892, %vm895
      %v899 = vsel %vm896, 1, 0
      %v900 = vsel %vm897, 1, 0
      %v901 = vsel %vm898, 1, 0
      %v902 = vcvt.s32.f32 %v899
      %v903 = vcvt.s32.f32 %v900
      %v904 = vcvt.s32.f32 %v901
      %v905 = vpack.c.bf16 %v903, %v902
      %v906 = vpack.c.bf16 %v904, %v904
      %v907 = vpack.c.bf16 %v883, %v882
      %v908 = vpack.c.bf16 %v884, %v884
      %v909 = vmul.bf16 %v907, %v905
      %v910 = vmul.bf16 %v908, %v906
      %v912 = vshrl.u32 %v909, 16
      %v914 = vshll.u32 %v909, 16
      %v916 = vrot.slane %v914, 1
      %v917 = vor.u32 %v912, %v916
      %v919 = vshll.u32 %v910, 16
      %v921 = vrot.slane %v919, 1
      %v922 = vsel %vm460, %v917, %v921
      %v923 = vshrl.u32 %v910, 16
      %v925 = vor.u32 %v923, %v921
      %926 = vrot.lane.b32.xlu0 %v922, 64
      %v927 = vpop.permute.xlu0 %926
      %928 = vrot.lane.b32.xlu0 %v925, 64
      %v929 = vpop.permute.xlu0 %928
      %v932 = vrot.slane %v909, 1
      %v933 = vrot.slane %v910, 1
      %v934 = vsel %vm480, %v932, %v933
      %v935 = vrot.slane %v912, 1
      %v936 = vrot.slane %v914, 2
      %v937 = vor.u32 %v935, %v936
      %v938 = vrot.slane %v923, 1
      %v939 = vrot.slane %v919, 2
      %v940 = vor.u32 %v938, %v939
      %v941 = vsel %vm488, %v937, %v940
      %942 = vrot.lane.b32.xlu0 %v941, 64
      %v943 = vpop.permute.xlu0 %942
      %944 = vrot.lane.b32.xlu0 %v940, 64
      %v945 = vpop.permute.xlu0 %944
      %v946 = vrot.slane %v909, 2
      %v947 = vrot.slane %v910, 2
      %v948 = vsel %vm500, %v946, %v947
      %v950 = vsel %vm523, %v909, %v927
      %v953 = vsel %vm523, %v910, %v929
      %v957 = vsel %vm523, %v934, %v943
      %v961 = vsel %vm523, %v933, %v945
      %v963 = vld [vmem:[%s6] sm:$0xf]
      %v964 = vld [vmem:[%s6 + $0x4] sm:$0xf]
      %v965 = vld [vmem:[%s6 + $0x8] sm:$0xf]
      %v966 = vld [vmem:[%s6 + $0xc] sm:$0xf]
      %v967 = vld [vmem:[%s6 + $0x10] sm:$0xf]
      %v968 = vld [vmem:[%s6 + $0x14] sm:$0xf]
      %v969 = vld [vmem:[%s6 + $0x18] sm:$0xf]
      %v970 = vld [vmem:[%s6 + $0x1c] sm:$0xf]
      %v971 = vld [vmem:[%s6 + $0x20] sm:$0xf]
      %v972 = vld [vmem:[%s6 + $0x24] sm:$0xf]
      %v973 = vld [vmem:[%s6 + $0x28] sm:$0xf]
      %v974 = vld [vmem:[%s6 + $0x2c] sm:$0xf]
      %v975 = vld [vmem:[%s6 + $0x30] sm:$0xf]
      %v976 = vld [vmem:[%s6 + $0x34] sm:$0xf]
      %v977 = vld [vmem:[%s6 + $0x38] sm:$0xf]
      %v978 = vld [vmem:[%s6 + $0x3c] sm:$0xf]
      %v979 = vld [vmem:[%s6 + $0x40] sm:$0xf]
      %v980 = vld [vmem:[%s6 + $0x44] sm:$0xf]
      %v981 = vld [vmem:[%s6 + $0x48] sm:$0xf]
      %v982 = vld [vmem:[%s6 + $0x4c] sm:$0xf]
      %v983 = vld [vmem:[%s6 + $0x50] sm:$0xf]
      %v984 = vld [vmem:[%s6 + $0x54] sm:$0xf]
      %v985 = vld [vmem:[%s6 + $0x58] sm:$0xf]
      %v986 = vld [vmem:[%s6 + $0x5c] sm:$0xf]
      %v987 = vld [vmem:[%s6 + $0x60] sm:$0xf]
      %v988 = vld [vmem:[%s6 + $0x64] sm:$0xf]
      %v989 = vld [vmem:[%s6 + $0x68] sm:$0xf]
      %v990 = vld [vmem:[%s6 + $0x6c] sm:$0xf]
      %v991 = vld [vmem:[%s6 + $0x70] sm:$0xf]
      %v992 = vld [vmem:[%s6 + $0x74] sm:$0xf]
      %v993 = vld [vmem:[%s6 + $0x78] sm:$0xf]
      %v994 = vld [vmem:[%s6 + $0x7c] sm:$0xf]
      %v995 = vld [vmem:[%s6 + $0x80] sm:$0xf]
      %v996 = vld [vmem:[%s6 + $0x84] sm:$0xf]
      %v997 = vld [vmem:[%s6 + $0x88] sm:$0xf]
      %v998 = vld [vmem:[%s6 + $0x8c] sm:$0xf]
      %v999 = vld [vmem:[%s6 + $0x90] sm:$0xf]
      %v1000 = vld [vmem:[%s6 + $0x94] sm:$0xf]
      %v1001 = vld [vmem:[%s6 + $0x98] sm:$0xf]
      %v1002 = vld [vmem:[%s6 + $0x9c] sm:$0xf]
      %v1003 = vld [vmem:[%s7] sm:$0x1]
      %v1005 = vlaneseq
      %v1006 = vshrl.u32 %v1005, 7
      %v1007 = vsub.s32 0, %v1006
      %v1008 = vrot.slane %v1003, %v1007
      %v1050 = vunpack.c.l.b16 %v963
      %v1051 = vunpack.c.l.b16 %v964
      %v1052 = vunpack.c.l.b16 %v965
      %v1053 = vunpack.c.l.b16 %v966
      %v1054 = vunpack.c.l.b16 %v967
      %v1055 = vunpack.c.l.b16 %v968
      %v1056 = vunpack.c.l.b16 %v969
      %v1057 = vunpack.c.l.b16 %v970
      %v1058 = vunpack.c.l.b16 %v971
      %v1059 = vunpack.c.l.b16 %v972
      %v1060 = vunpack.c.l.b16 %v973
      %v1061 = vunpack.c.l.b16 %v974
      %v1062 = vunpack.c.l.b16 %v975
      %v1063 = vunpack.c.l.b16 %v976
      %v1064 = vunpack.c.l.b16 %v977
      %v1065 = vunpack.c.l.b16 %v978
      %v1066 = vunpack.c.l.b16 %v979
      %v1067 = vunpack.c.l.b16 %v980
      %v1068 = vunpack.c.l.b16 %v981
      %v1069 = vunpack.c.l.b16 %v982
      %v1070 = vunpack.c.l.b16 %v983
      %v1071 = vunpack.c.l.b16 %v984
      %v1072 = vunpack.c.l.b16 %v985
      %v1073 = vunpack.c.l.b16 %v986
      %v1074 = vunpack.c.l.b16 %v987
      %v1075 = vunpack.c.l.b16 %v988
      %v1076 = vunpack.c.l.b16 %v989
      %v1077 = vunpack.c.l.b16 %v990
      %v1078 = vunpack.c.l.b16 %v991
      %v1079 = vunpack.c.l.b16 %v992
      %v1080 = vunpack.c.l.b16 %v993
      %v1081 = vunpack.c.l.b16 %v994
      %v1082 = vunpack.c.l.b16 %v995
      %v1083 = vunpack.c.l.b16 %v996
      %v1084 = vunpack.c.l.b16 %v997
      %v1085 = vunpack.c.l.b16 %v998
      %v1086 = vunpack.c.l.b16 %v999
      %v1087 = vunpack.c.l.b16 %v1000
      %v1088 = vunpack.c.l.b16 %v1001
      %v1089 = vunpack.c.l.b16 %v1002
      %v1090 = vpack.c.b16 %v1051, %v1050
      %v1091 = vpack.c.b16 %v1053, %v1052
      %v1092 = vpack.c.b16 %v1055, %v1054
      %v1093 = vpack.c.b16 %v1057, %v1056
      %v1094 = vpack.c.b16 %v1059, %v1058
      %v1095 = vpack.c.b16 %v1061, %v1060
      %v1096 = vpack.c.b16 %v1063, %v1062
      %v1097 = vpack.c.b16 %v1065, %v1064
      %v1098 = vpack.c.b16 %v1067, %v1066
      %v1099 = vpack.c.b16 %v1069, %v1068
      %v1100 = vpack.c.b16 %v1071, %v1070
      %v1101 = vpack.c.b16 %v1073, %v1072
      %v1102 = vpack.c.b16 %v1075, %v1074
      %v1103 = vpack.c.b16 %v1077, %v1076
      %v1104 = vpack.c.b16 %v1079, %v1078
      %v1105 = vpack.c.b16 %v1081, %v1080
      %v1106 = vpack.c.b16 %v1083, %v1082
      %v1107 = vpack.c.b16 %v1085, %v1084
      %v1108 = vpack.c.b16 %v1087, %v1086
      %v1109 = vpack.c.b16 %v1089, %v1088
      %v1131 = vsel %vm523, %v948, 0
      %v1134 = vsel %vm523, %v947, 0
      %1136 = vmatprep.subr.bf16.mxu0 0
      %1137 = vmatpush1.bf16.msra.mxu0 %v1090
      %1138 = vmatprep.subr.bf16.mxu0 0
      %1139 = vmatpush1.bf16.msra.mxu0 %v1091
      %1140 = vmatprep.subr.bf16.mxu0 0
      %1141 = vmatpush1.bf16.msra.mxu0 %v1092
      %1142 = vmatprep.subr.bf16.mxu0 0
      %1143 = vmatpush1.bf16.msra.mxu0 %v1093
      %1144 = vmatprep.subr.bf16.mxu0 0
      %1145 = vmatpush1.bf16.msra.mxu0 %v1094
      %1146 = vmatprep.subr.bf16.mxu0 0
      %1147 = vmatpush1.bf16.msra.mxu0 %v1095
      %1148 = vmatprep.subr.bf16.mxu0 0
      %1149 = vmatpush1.bf16.msra.mxu0 %v1096
      %1150 = vmatprep.subr.bf16.mxu0 0
      %1151 = vmatpush1.bf16.msra.mxu0 %v1097
      %1152 = vmatprep.subr.bf16.mxu0 0
      %1153 = vmatpush1.bf16.msra.mxu0 %v1098
      %1154 = vmatprep.subr.bf16.mxu0 0
      %1155 = vmatpush1.bf16.msra.mxu0 %v1099
      %1156 = vmatprep.subr.bf16.mxu0 0
      %1157 = vmatpush1.bf16.msra.mxu0 %v1100
      %1158 = vmatprep.subr.bf16.mxu0 0
      %1159 = vmatpush1.bf16.msra.mxu0 %v1101
      %1160 = vmatprep.subr.bf16.mxu0 0
      %1161 = vmatpush1.bf16.msra.mxu0 %v1102
      %1162 = vmatprep.subr.bf16.mxu0 0
      %1163 = vmatpush1.bf16.msra.mxu0 %v1103
      %1164 = vmatprep.subr.bf16.mxu0 0
      %1165 = vmatpush1.bf16.msra.mxu0 %v1104
      %1166 = vmatprep.subr.bf16.mxu0 0
      %1167 = vmatpush1.bf16.msra.mxu0 %v1105
      %1168 = vmatprep.mubr.bf16.mxu0 %v957
      %1169 = vmatmul.mubr.bf16.gmra.mrb[0].mxu0 %v950
      %v1170 = vpop.f32.mrb[0].mxu0
      %v1171 = vadd.f32 %v1008, %v1170
      %v1172 = vpop.f32.mrb[0].mxu0
      %v1173 = vpop.f32.mrb[0].mxu0
      %v1174 = vadd.f32 %v1008, %v1173
      %v1175 = vpop.f32.mrb[0].mxu0
      %1176 = vmatprep.mubr.bf16.mxu0 %v961
      %1177 = vmatmul.mubr.bf16.gmra.mrb[0].mxu0 %v953
      %v1178 = vpop.f32.mrb[0].mxu0
      %v1179 = vadd.f32 %v1008, %v1178
      %v1180 = vpop.f32.mrb[0].mxu0
      %v1181 = vpop.f32.mrb[0].mxu0
      %v1182 = vpop.f32.mrb[0].mxu0
      %1183 = vdwg.mxu0
      %1184 = vmatprep.subr.bf16.mxu0 0
      %1185 = vmatpush1.bf16.msra.mxu0 %v1106
      %1186 = vmatprep.subr.bf16.mxu0 0
      %1187 = vmatpush1.bf16.msra.mxu0 %v1107
      %1188 = vmatprep.subr.bf16.mxu0 0
      %1189 = vmatpush1.bf16.msra.mxu0 %v1108
      %1190 = vmatprep.subr.bf16.mxu0 0
      %1191 = vmatpush1.bf16.msra.mxu0 %v1109
      %1192 = vmatprep.subr.bf16.mxu0 0
      %1193 = vmatpush1.bf16.msra.mxu0 0
      %1194 = vmatprep.subr.bf16.mxu0 0
      %1195 = vmatpush1.bf16.msra.mxu0 0
      %1196 = vmatprep.subr.bf16.mxu0 0
      %1197 = vmatpush1.bf16.msra.mxu0 0
      %1198 = vmatprep.subr.bf16.mxu0 0
      %1199 = vmatpush1.bf16.msra.mxu0 0
      %1200 = vmatprep.subr.bf16.mxu0 0
      %1201 = vmatpush1.bf16.msra.mxu0 0
      %1202 = vmatprep.subr.bf16.mxu0 0
      %1203 = vmatpush1.bf16.msra.mxu0 0
      %1204 = vmatprep.subr.bf16.mxu0 0
      %1205 = vmatpush1.bf16.msra.mxu0 0
      %1206 = vmatprep.subr.bf16.mxu0 0
      %1207 = vmatpush1.bf16.msra.mxu0 0
      %1208 = vmatprep.subr.bf16.mxu0 0
      %1209 = vmatpush1.bf16.msra.mxu0 0
      %1210 = vmatprep.subr.bf16.mxu0 0
      %1211 = vmatpush1.bf16.msra.mxu0 0
      %1212 = vmatprep.subr.bf16.mxu0 0
      %1213 = vmatpush1.bf16.msra.mxu0 0
      %1214 = vmatprep.subr.bf16.mxu0 0
      %1215 = vmatpush1.bf16.msra.mxu0 0
      %1216 = vmatprep.mubr.bf16.mxu0 0
      %1217 = vmatmul.mubr.bf16.gmra.mrb[0].mxu0 %v1131
      %v1218 = vpop.f32.mrb[0].mxu0
      %v1219 = vadd.f32 %v1171, %v1218
      %v1220 = vpop.f32.mrb[0].mxu0
      %v1221 = vpop.f32.mrb[0].mxu0
      %v1222 = vadd.f32 %v1174, %v1221
      %v1223 = vpop.f32.mrb[0].mxu0
      %1224 = vmatprep.mubr.bf16.mxu0 0
      %1225 = vmatmul.mubr.bf16.gmra.mrb[0].mxu0 %v1134
      %v1226 = vpop.f32.mrb[0].mxu0
      %v1227 = vadd.f32 %v1179, %v1226
      %v1228 = vpop.f32.mrb[0].mxu0
      %v1229 = vpop.f32.mrb[0].mxu0
      %v1230 = vpop.f32.mrb[0].mxu0
      %1231 = vdwg.mxu0
      %vm1232 = vcmp.ge.f32.partialorder %v1219, 0.0
      %vm1233 = vcmp.ge.f32.partialorder %v1222, 0.0
      %vm1234 = vcmp.ge.f32.partialorder %v1227, 0.0
      %v1235 = vmul.f32 %v1219, 0.1
      %v1236 = vmul.f32 %v1222, 0.1
      %v1237 = vmul.f32 %v1227, 0.1
      %v1238 = vsel %vm1232, %v1219, %v1235
      %v1239 = vsel %vm1233, %v1222, %v1236
      %v1240 = vsel %vm1234, %v1227, %v1237
      %s1241 = sadd.s32 %s445, 4294967295
      %v1242 = vstv %s1241
      %v1243 = vadd.s32 %v1242, %v643
      %v1244 = vadd.s32 %v1242, %v644
      %v1245 = vadd.s32 %v1242, %v645
      %vm1246 = vcmp.ge.s32.totalorder %v1243, 0
      %vm1247 = vcmp.ge.s32.totalorder %v1244, 0
      %vm1248 = vcmp.ge.s32.totalorder %v1245, 0
      %vm1249 = vcmp.lt.s32.totalorder %v1243, 16
      %vm1250 = vcmp.lt.s32.totalorder %v1244, 16
      %vm1251 = vcmp.lt.s32.totalorder %v1245, 16
      %vm1252 = vmand %vm1246, %vm1249
      %vm1253 = vmand %vm1247, %vm1250
      %vm1254 = vmand %vm1248, %vm1251
      %v1255 = vsel %vm1252, 1, 0
      %v1256 = vsel %vm1253, 1, 0
      %v1257 = vsel %vm1254, 1, 0
      %v1258 = vcvt.s32.f32 %v1255
      %v1259 = vcvt.s32.f32 %v1256
      %v1260 = vcvt.s32.f32 %v1257
      %v1261 = vpack.c.bf16 %v1259, %v1258
      %v1262 = vpack.c.bf16 %v1260, %v1260
      %v1263 = vpack.c.bf16 %v1239, %v1238
      %v1264 = vpack.c.bf16 %v1240, %v1240
      %v1265 = vmul.bf16 %v1263, %v1261
      %v1266 = vmul.bf16 %v1264, %v1262
      %v1267 = vld [vmem:[%s8] sm:$0xf]
      %v1268 = vld [vmem:[%s8 + $0x4] sm:$0xf]
      %v1269 = vld [vmem:[%s8 + $0x8] sm:$0xf]
      %v1270 = vld [vmem:[%s8 + $0xc] sm:$0xf]
      %v1271 = vld [vmem:[%s8 + $0x10] sm:$0xf]
      %v1272 = vld [vmem:[%s8 + $0x14] sm:$0xf]
      %v1273 = vld [vmem:[%s8 + $0x18] sm:$0xf]
      %v1274 = vld [vmem:[%s8 + $0x1c] sm:$0xf]
      %s1275 = scalar_lea.vmem %s8, 32
      %v1276 = vld [vmem:[%s1275] sm:$0xf]
      %v1277 = vld [vmem:[%s1275 + $0x4] sm:$0xf]
      %v1278 = vld [vmem:[%s1275 + $0x8] sm:$0xf]
      %v1279 = vld [vmem:[%s1275 + $0xc] sm:$0xf]
      %v1280 = vld [vmem:[%s1275 + $0x10] sm:$0xf]
      %v1281 = vld [vmem:[%s1275 + $0x14] sm:$0xf]
      %v1282 = vld [vmem:[%s1275 + $0x18] sm:$0xf]
      %v1283 = vld [vmem:[%s1275 + $0x1c] sm:$0xf]
      %v1285 = vshrl.u32 %v1265, 16
      %v1287 = vshll.u32 %v1265, 16
      %v1289 = vrot.slane %v1287, 1
      %v1290 = vor.u32 %v1285, %v1289
      %v1292 = vshll.u32 %v1266, 16
      %v1294 = vrot.slane %v1292, 1
      %v1295 = vsel %vm460, %v1290, %v1294
      %v1304 = vunpack.c.l.b16 %v1276
      %v1305 = vunpack.c.l.b16 %v1277
      %v1306 = vunpack.c.l.b16 %v1278
      %v1307 = vunpack.c.l.b16 %v1279
      %v1308 = vunpack.c.l.b16 %v1280
      %v1309 = vunpack.c.l.b16 %v1281
      %v1310 = vunpack.c.l.b16 %v1282
      %v1311 = vunpack.c.l.b16 %v1283
      %v1312 = vpack.c.b16 %v1305, %v1304
      %v1313 = vpack.c.b16 %v1307, %v1306
      %v1314 = vpack.c.b16 %v1309, %v1308
      %v1315 = vpack.c.b16 %v1311, %v1310
      %v1321 = vsel %vm523, %v1295, 0
      %1323 = vmatprep.subr.bf16.mxu0 0
      %1324 = vmatpush1.bf16.msra.mxu0 %v1312
      %1325 = vmatprep.subr.bf16.mxu0 0
      %1326 = vmatpush1.bf16.msra.mxu0 %v1313
      %1327 = vmatprep.subr.bf16.mxu0 0
      %1328 = vmatpush1.bf16.msra.mxu0 %v1314
      %1329 = vmatprep.subr.bf16.mxu0 0
      %1330 = vmatpush1.bf16.msra.mxu0 %v1315
      %1331 = vmatprep.subr.bf16.mxu0 0
      %1332 = vmatpush1.bf16.msra.mxu0 0
      %1333 = vmatprep.subr.bf16.mxu0 0
      %1334 = vmatpush1.bf16.msra.mxu0 0
      %1335 = vmatprep.subr.bf16.mxu0 0
      %1336 = vmatpush1.bf16.msra.mxu0 0
      %1337 = vmatprep.subr.bf16.mxu0 0
      %1338 = vmatpush1.bf16.msra.mxu0 0
      %1339 = vmatprep.subr.bf16.mxu0 0
      %1340 = vmatpush1.bf16.msra.mxu0 0
      %1341 = vmatprep.subr.bf16.mxu0 0
      %1342 = vmatpush1.bf16.msra.mxu0 0
      %1343 = vmatprep.subr.bf16.mxu0 0
      %1344 = vmatpush1.bf16.msra.mxu0 0
      %1345 = vmatprep.subr.bf16.mxu0 0
      %1346 = vmatpush1.bf16.msra.mxu0 0
      %1347 = vmatprep.subr.bf16.mxu0 0
      %1348 = vmatpush1.bf16.msra.mxu0 0
      %1349 = vmatprep.subr.bf16.mxu0 0
      %1350 = vmatpush1.bf16.msra.mxu0 0
      %1351 = vmatprep.subr.bf16.mxu0 0
      %1352 = vmatpush1.bf16.msra.mxu0 0
      %1353 = vmatprep.subr.bf16.mxu0 0
      %1354 = vmatpush1.bf16.msra.mxu0 0
      %1355 = vmatprep.mubr.bf16.mxu0 0
      %1356 = vmatmul.mubr.bf16.gmra.mrb[0].mxu0 %v1321
      %v1357 = vpop.f32.mrb[0].mxu0
      %v1358 = vadd.f32 0.0, %v1357
      %v1359 = vpop.f32.mrb[0].mxu0
      %v1360 = vpop.f32.mrb[0].mxu0
      %v1361 = vadd.f32 0.0, %v1360
      %v1362 = vpop.f32.mrb[0].mxu0
      %1363 = vdwg.mxu0
      %v1372 = vunpack.c.l.b16 %v1267
      %v1373 = vunpack.c.l.b16 %v1268
      %v1374 = vunpack.c.l.b16 %v1269
      %v1375 = vunpack.c.l.b16 %v1270
      %v1376 = vunpack.c.l.b16 %v1271
      %v1377 = vunpack.c.l.b16 %v1272
      %v1378 = vunpack.c.l.b16 %v1273
      %v1379 = vunpack.c.l.b16 %v1274
      %v1380 = vpack.c.b16 %v1373, %v1372
      %v1381 = vpack.c.b16 %v1375, %v1374
      %v1382 = vpack.c.b16 %v1377, %v1376
      %v1383 = vpack.c.b16 %v1379, %v1378
      %v1388 = vsel %vm523, %v1265, 0
      %1390 = vmatprep.subr.bf16.mxu0 0
      %1391 = vmatpush1.bf16.msra.mxu0 %v1380
      %1392 = vmatprep.subr.bf16.mxu0 0
      %1393 = vmatpush1.bf16.msra.mxu0 %v1381
      %1394 = vmatprep.subr.bf16.mxu0 0
      %1395 = vmatpush1.bf16.msra.mxu0 %v1382
      %1396 = vmatprep.subr.bf16.mxu0 0
      %1397 = vmatpush1.bf16.msra.mxu0 %v1383
      %1398 = vmatprep.subr.bf16.mxu0 0
      %1399 = vmatpush1.bf16.msra.mxu0 0
      %1400 = vmatprep.subr.bf16.mxu0 0
      %1401 = vmatpush1.bf16.msra.mxu0 0
      %1402 = vmatprep.subr.bf16.mxu0 0
      %1403 = vmatpush1.bf16.msra.mxu0 0
      %1404 = vmatprep.subr.bf16.mxu0 0
      %1405 = vmatpush1.bf16.msra.mxu0 0
      %1406 = vmatprep.subr.bf16.mxu0 0
      %1407 = vmatpush1.bf16.msra.mxu0 0
      %1408 = vmatprep.subr.bf16.mxu0 0
      %1409 = vmatpush1.bf16.msra.mxu0 0
      %1410 = vmatprep.subr.bf16.mxu0 0
      %1411 = vmatpush1.bf16.msra.mxu0 0
      %1412 = vmatprep.subr.bf16.mxu0 0
      %1413 = vmatpush1.bf16.msra.mxu0 0
      %1414 = vmatprep.subr.bf16.mxu0 0
      %1415 = vmatpush1.bf16.msra.mxu0 0
      %1416 = vmatprep.subr.bf16.mxu0 0
      %1417 = vmatpush1.bf16.msra.mxu0 0
      %1418 = vmatprep.subr.bf16.mxu0 0
      %1419 = vmatpush1.bf16.msra.mxu0 0
      %1420 = vmatprep.subr.bf16.mxu0 0
      %1421 = vmatpush1.bf16.msra.mxu0 0
      %1422 = vmatprep.mubr.bf16.mxu0 0
      %1423 = vmatmul.mubr.bf16.gmra.mrb[0].mxu0 %v1388
      %v1424 = vpop.f32.mrb[0].mxu0
      %v1425 = vadd.f32 %v1358, %v1424
      %v1426 = vpop.f32.mrb[0].mxu0
      %v1427 = vpop.f32.mrb[0].mxu0
      %v1428 = vadd.f32 %v1361, %v1427
      %v1429 = vpop.f32.mrb[0].mxu0
      %1430 = vdwg.mxu0
      %s1431 = scalar_lea.vmem %s8, 64
      %v1432 = vld [vmem:[%s1431] sm:$0xf]
      %v1433 = vld [vmem:[%s1431 + $0x4] sm:$0xf]
      %v1434 = vld [vmem:[%s1431 + $0x8] sm:$0xf]
      %v1435 = vld [vmem:[%s1431 + $0xc] sm:$0xf]
      %v1436 = vld [vmem:[%s1431 + $0x10] sm:$0xf]
      %v1437 = vld [vmem:[%s1431 + $0x14] sm:$0xf]
      %v1438 = vld [vmem:[%s1431 + $0x18] sm:$0xf]
      %v1439 = vld [vmem:[%s1431 + $0x1c] sm:$0xf]
      %v1442 = vrot.slane %v1265, 1
      %v1443 = vrot.slane %v1266, 1
      %v1444 = vsel %vm480, %v1442, %v1443
      %v1453 = vunpack.c.l.b16 %v1432
      %v1454 = vunpack.c.l.b16 %v1433
      %v1455 = vunpack.c.l.b16 %v1434
      %v1456 = vunpack.c.l.b16 %v1435
      %v1457 = vunpack.c.l.b16 %v1436
      %v1458 = vunpack.c.l.b16 %v1437
      %v1459 = vunpack.c.l.b16 %v1438
      %v1460 = vunpack.c.l.b16 %v1439
      %v1461 = vpack.c.b16 %v1454, %v1453
      %v1462 = vpack.c.b16 %v1456, %v1455
      %v1463 = vpack.c.b16 %v1458, %v1457
      %v1464 = vpack.c.b16 %v1460, %v1459
      %v1470 = vsel %vm523, %v1444, 0
      %1472 = vmatprep.subr.bf16.mxu0 0
      %1473 = vmatpush1.bf16.msra.mxu0 %v1461
      %1474 = vmatprep.subr.bf16.mxu0 0
      %1475 = vmatpush1.bf16.msra.mxu0 %v1462
      %1476 = vmatprep.subr.bf16.mxu0 0
      %1477 = vmatpush1.bf16.msra.mxu0 %v1463
      %1478 = vmatprep.subr.bf16.mxu0 0
      %1479 = vmatpush1.bf16.msra.mxu0 %v1464
      %1480 = vmatprep.subr.bf16.mxu0 0
      %1481 = vmatpush1.bf16.msra.mxu0 0
      %1482 = vmatprep.subr.bf16.mxu0 0
      %1483 = vmatpush1.bf16.msra.mxu0 0
      %1484 = vmatprep.subr.bf16.mxu0 0
      %1485 = vmatpush1.bf16.msra.mxu0 0
      %1486 = vmatprep.subr.bf16.mxu0 0
      %1487 = vmatpush1.bf16.msra.mxu0 0
      %1488 = vmatprep.subr.bf16.mxu0 0
      %1489 = vmatpush1.bf16.msra.mxu0 0
      %1490 = vmatprep.subr.bf16.mxu0 0
      %1491 = vmatpush1.bf16.msra.mxu0 0
      %1492 = vmatprep.subr.bf16.mxu0 0
      %1493 = vmatpush1.bf16.msra.mxu0 0
      %1494 = vmatprep.subr.bf16.mxu0 0
      %1495 = vmatpush1.bf16.msra.mxu0 0
      %1496 = vmatprep.subr.bf16.mxu0 0
      %1497 = vmatpush1.bf16.msra.mxu0 0
      %1498 = vmatprep.subr.bf16.mxu0 0
      %1499 = vmatpush1.bf16.msra.mxu0 0
      %1500 = vmatprep.subr.bf16.mxu0 0
      %1501 = vmatpush1.bf16.msra.mxu0 0
      %1502 = vmatprep.subr.bf16.mxu0 0
      %1503 = vmatpush1.bf16.msra.mxu0 0
      %1504 = vmatprep.mubr.bf16.mxu0 0
      %1505 = vmatmul.mubr.bf16.gmra.mrb[0].mxu0 %v1470
      %v1506 = vpop.f32.mrb[0].mxu0
      %v1507 = vadd.f32 0.0, %v1506
      %v1508 = vpop.f32.mrb[0].mxu0
      %v1509 = vpop.f32.mrb[0].mxu0
      %v1510 = vadd.f32 0.0, %v1509
      %v1511 = vpop.f32.mrb[0].mxu0
      %1512 = vdwg.mxu0
      %v1513 = vadd.f32 %v1425, %v1507
      %v1514 = vadd.f32 %v1428, %v1510
      %v1515 = vld [vmem:[#allocation2] sm:$0x1]
      %v1517 = vlaneseq
      %v1518 = vshrl.u32 %v1517, 7
      %v1519 = vsub.s32 0, %v1518
      %v1520 = vrot.slane %v1515, %v1519
      %v1522 = vadd.f32 %v1513, %v1520
      %v1523 = vadd.f32 %v1514, %v1520
      %vm1524 = vcmask 7168
      %1525 = vst.msk [vmem:[%s442] sm:$0xff] %vm1524, %v1522
      %1526 = vst.msk [vmem:[%s442 + $0x8] sm:$0xff] %vm1524, %v1523
      %s1527 = smul.u32 2, %s28
      %p1528 = scmp.lt.s32.totalorder %s27, 1
      %s1529 = scalar_select %p1528, %s27, 1
      %p1530 = scmp.lt.s32.totalorder %s1527, 1
      %s1531 = scalar_select %p1530, %s1527, 1
      %s1532 = smul.addr %s1529, 2
      %s1533 = sadd.s32 %s1531, %s1532
      %s1534 = smul.addr %s1533, 8
      %s1535 = scalar_lea.vmem %s10, %s1534
      // Predicated region
      $region61: #{wavlm_discriminator_forward.3} parent=59 // pred_check
        %p1536 = pneg %p281
      $region62: #{wavlm_discriminator_forward.3} parent=59 // pred_check_branch
        %1538 = sbr.rel (%p1536) target = $region64
      $region63: #{wavlm_discriminator_forward.3} parent=59 // pred_region
        %s1539 = smul.u32 2, %s28
      $region64: #{wavlm_discriminator_forward.3} parent=59 // pred_fallthru
        _
    $region60: #{wavlm_discriminator_forward.3} parent=5 // pred_fallthru
      _
    %p1540 = scmp.le.s32.totalorder 2, %s18
    // Predicated region
    $region65: #{wavlm_discriminator_forward.3} parent=5 // pred_check
      %p1541 = pneg %p1540
    $region66: #{wavlm_discriminator_forward.3} parent=5 // pred_check_branch
      %1543 = sbr.rel (%p1541) target = $region68
    $region67: #{wavlm_discriminator_forward.3} parent=5 // pred_region
      %s1544 = ssub.s32 %s18, 2
      // Predicated region
      $region69: #{wavlm_discriminator_forward.3} parent=67 // pred_check
        %p1545 = pneg %p287
      $region70: #{wavlm_discriminator_forward.3} parent=67 // pred_check_branch
        %1547 = sbr.rel (%p1545) target = $region72
      $region71: #{wavlm_discriminator_forward.3} parent=67 // pred_region
        %s1548 = smul.u32 2, %s30
        %p1549 = scmp.lt.s32.totalorder %s29, 1
        %s1550 = scalar_select %p1549, %s29, 1
        %p1551 = scmp.lt.s32.totalorder %s1548, 1
        %s1552 = scalar_select %p1551, %s1548, 1
        %s1553 = smul.addr %s1550, 2
        %s1554 = sadd.s32 %s1552, %s1553
        %s1555 = smul.addr %s1554, 8
        %s1556 = scalar_lea.vmem %s10, %s1555
      $region72: #{wavlm_discriminator_forward.3} parent=67 // pred_fallthru
        _
    $region68: #{wavlm_discriminator_forward.3} parent=5 // pred_fallthru
      _
  $region6: #{wavlm_discriminator_forward.3} parent=0 // loop_footer
    %s22 = sadd.s32 1, %s18
  $region7: #{wavlm_discriminator_forward.3} parent=0 // loop_footer_branch
    %17 = sbr.rel target = $region3
  $region8: #{wavlm_discriminator_forward.3} parent=0 // loop_exit
    _

</llo_original>
